<compile_context>
chip_gen: v7x
topology: tpu7x:2x2x1
jax: 0.10.0
libtpu: 0.0.40
codegen_flags: <defaults>
</compile_context>

<pallas_src>
import functools
import math

import jax
import jax.numpy as jnp
from jax import lax
from jax.experimental import pallas as pl
from jax.experimental.pallas import tpu as pltpu

_EPS = 1e-5  # torch.nn.LayerNorm default eps

# Kernel-side (pre-transposed / bf16) parameter order.
PREP_ORDER = (
    "ln1_w", "ln1_b",        # f32 (1, D)
    "wqkv_t", "bqkv",        # bf16 (D, 3D) [Q-scaled], f32 (1, 3D) [Q-scaled]
    "wo_t", "bo",            # bf16 (D, D),  f32 (1, D)
    "ln2_w", "ln2_b",        # f32 (1, D)
    "wfc_t", "bfc",          # bf16 (D, H),  f32 (1, H)
    "wproj_t", "bproj",      # bf16 (H, D),  f32 (1, D)
)


def _layernorm(x, w, b):
    """f32 LayerNorm; w/b are (1, D)."""
    mu = jnp.mean(x, axis=-1, keepdims=True)
    var = jnp.mean((x - mu) ** 2, axis=-1, keepdims=True)
    return (x - mu) * lax.rsqrt(var + _EPS) * w + b


def _gelu_exact(x):
    # torch.nn.GELU default (exact, erf-based).
    return 0.5 * x * (1.0 + lax.erf(x * (2.0 ** -0.5)))


def resblock_kernel(*refs, n_head, mlp_chunk, num_mlp_chunks, has_mask):
    """One ResidualAttentionBlock for a single batch element (x block = (1, S, D))."""
    idx = 0
    x_ref = refs[idx]; idx += 1
    mask_ref = None
    if has_mask:
        mask_ref = refs[idx]; idx += 1
    (ln1_w, ln1_b, wqkv_t, bqkv, wo_t, bo,
     ln2_w, ln2_b, wfc_t, bfc, wproj_t, bproj) = refs[idx:idx + 12]
    idx += 12
    o_ref = refs[idx]; idx += 1
    ctx_ref = refs[idx]                                  # VMEM scratch (S, D) bf16

    x = x_ref[0].astype(jnp.float32)                     # (S, D) f32 residual stream
    S, D = x.shape
    hd = D // n_head

    # ---------------- attention branch: x + out_proj(MHA(LN1(x))) ----------------
    h = _layernorm(x, ln1_w[...], ln1_b[...])
    # QKV projection: bf16 MXU matmul, f32 accumulation.  Q-scale folded into weights.
    qkv = jnp.dot(h.astype(jnp.bfloat16), wqkv_t[...],
                  preferred_element_type=jnp.float32) + bqkv[...]       # (S, 3D) f32
    qkv_bf = qkv.astype(jnp.bfloat16)                    # single cast; halves live buffer

    if has_mask:
        mask = mask_ref[...]                             # (S, S) additive mask, f32

    # Static loop over heads; each head's context is written straight into the
    # VMEM scratch slice, so nothing per-head stays live across iterations.
    for hi in range(n_head):
        lo = hi * hd
        q = qkv_bf[:, lo:lo + hd]                        # (S, hd) bf16 (already scaled)
        k = qkv_bf[:, D + lo:D + lo + hd]                # (S, hd) bf16
        v = qkv_bf[:, 2 * D + lo:2 * D + lo + hd]        # (S, hd) bf16
        # q @ k^T without materializing a transposed copy.
        s = lax.dot_general(q, k, (((1,), (1,)), ((), ())),
                            preferred_element_type=jnp.float32)          # (S, S) f32
        if has_mask:
            s = s + mask
        m = jnp.max(s, axis=-1, keepdims=True)
        e = jnp.exp(s - m)
        p = e * pl.reciprocal(jnp.sum(e, axis=-1, keepdims=True), approx=True)
        ctx_ref[:, lo:lo + hd] = jnp.dot(
            p.astype(jnp.bfloat16), v,
            preferred_element_type=jnp.float32).astype(ctx_ref.dtype)

    # Single full-K out projection straight from the scratch ref.
    attn_out = jnp.dot(ctx_ref[...], wo_t[...],
                       preferred_element_type=jnp.float32) + bo[...]
    x1 = x + attn_out                                                   # ls_1 == Identity

    # ---------------- MLP branch: x1 + c_proj(GELU(c_fc(LN2(x1)))) ----------------
    h2 = _layernorm(x1, ln2_w[...], ln2_b[...]).astype(jnp.bfloat16)

    def mlp_body(ci, acc):
        c0 = ci * mlp_chunk
        if mlp_chunk % 128 == 0:
            c0 = pl.multiple_of(c0, 128)                 # lane-aligned chunk start
        fc = jnp.dot(h2, wfc_t[:, pl.ds(c0, mlp_chunk)],
                     preferred_element_type=jnp.float32) + bfc[:, pl.ds(c0, mlp_chunk)]
        g = _gelu_exact(fc)
        return acc + jnp.dot(g.astype(jnp.bfloat16), wproj_t[pl.ds(c0, mlp_chunk), :],
                             preferred_element_type=jnp.float32)

    mlp_acc = lax.fori_loop(0, num_mlp_chunks, mlp_body,
                            jnp.zeros((S, D), jnp.float32))
    mlp_out = mlp_acc + bproj[...]

    o_ref[0] = (x1 + mlp_out).astype(o_ref.dtype)                       # ls_2 == Identity


@functools.lru_cache(maxsize=1)
def _vmem_capacity_bytes():
    try:
        info = pltpu.get_tpu_info()
        cap = getattr(info, "vmem_capacity_bytes", None)
        if cap:
            return int(cap)
    except Exception:
        pass
    return 64 * 1024 * 1024  # conservative fallback: v7x floor (safe on all gens)


def _pick_mlp_chunk(hidden, max_chunk=1024):
    """Largest multiple-of-128 divisor of hidden <= max_chunk (or hidden itself)."""
    if hidden <= max_chunk:
        return hidden
    for c in range(max_chunk, 127, -128):
        if hidden % c == 0:
            return c
    return hidden


def _vmem_limit_bytes(S, D, hidden, mlp_chunk, has_mask):
    f32, bf16 = 4, 2
    weights = (4 * D * D + 2 * D * hidden) * bf16            # resident, single copy
    small = (6 * D + 3 * D + hidden) * f32                    # LN params + biases
    mask = (S * S * f32) if has_mask else 0
    io = 2 * 2 * S * D * bf16                                  # double-buffered bf16 x/out
    scratch = S * D * bf16                                     # ctx scratch
    act = (3 * S * D * f32                                     # x, x1, attn_out/h
           + 3 * S * D * (f32 + bf16)                          # qkv f32 + bf16
           + 2 * S * S * f32                                   # logits + exp
           + 2 * S * mlp_chunk * f32                           # fc + gelu chunk
           + S * D * f32)                                      # mlp accumulator
    est = int((weights + small + mask + io + scratch + act) * 1.5)   # 50% headroom
    cap = _vmem_capacity_bytes()
    return max(32 * 1024 * 1024, min(est, int(cap * 0.9)))


def _prepare_params(p, n_head, compute_dtype=jnp.bfloat16):
    """Pre-transpose weights once in the XLA wrapper, cast to bf16, fold the Q scale."""
    D = p["wqkv"].shape[1]
    hd = D // n_head
    scale = 1.0 / math.sqrt(hd)
    row_scale = jnp.concatenate(
        [jnp.full((D,), scale, jnp.float32), jnp.ones((2 * D,), jnp.float32)])
    wqkv = p["wqkv"].astype(jnp.float32) * row_scale[:, None]   # scale Q output rows
    bqkv = p["bqkv"].astype(jnp.float32) * row_scale[None, :]
    return dict(
        ln1_w=p["ln1_w"].astype(jnp.float32),
        ln1_b=p["ln1_b"].astype(jnp.float32),
        wqkv_t=wqkv.T.astype(compute_dtype),          # (D, 3D)
        bqkv=bqkv,                                    # (1, 3D) f32
        wo_t=p["wo"].T.astype(compute_dtype),         # (D, D)
        bo=p["bo"].astype(jnp.float32),
        ln2_w=p["ln2_w"].astype(jnp.float32),
        ln2_b=p["ln2_b"].astype(jnp.float32),
        wfc_t=p["wfc"].T.astype(compute_dtype),       # (D, H)
        bfc=p["bfc"].astype(jnp.float32),
        wproj_t=p["wproj"].T.astype(compute_dtype),   # (H, D)
        bproj=p["bproj"].astype(jnp.float32),
    )


def _resblock(x_bsd, mask, prep, n_head, mlp_chunk, vmem_limit):
    """x_bsd: (B, S, D) bf16 residual stream. One block via pallas_call, grid over B."""
    B, S, D = x_bsd.shape
    hidden = prep["wfc_t"].shape[1]
    num_mlp_chunks = hidden // mlp_chunk
    has_mask = mask is not None

    # Weights / biases / mask: whole-array VMEM residency, no double buffering.
    const_spec = pl.BlockSpec(memory_space=pltpu.MemorySpace.VMEM)

    in_specs = [pl.BlockSpec((1, S, D), lambda b: (b, 0, 0))]
    args = [x_bsd]
    if has_mask:
        in_specs.append(const_spec)
        args.append(mask)
    for name in PREP_ORDER:
        in_specs.append(const_spec)
        args.append(prep[name])

    kernel = functools.partial(
        resblock_kernel, n_head=n_head, mlp_chunk=mlp_chunk,
        num_mlp_chunks=num_mlp_chunks, has_mask=has_mask)

    return pl.pallas_call(
        kernel,
        out_shape=jax.ShapeDtypeStruct((B, S, D), x_bsd.dtype),
        grid=(B,),
        in_specs=in_specs,
        out_specs=pl.BlockSpec((1, S, D), lambda b: (b, 0, 0)),
        scratch_shapes=[pltpu.VMEM((S, D), jnp.bfloat16)],   # per-head ctx accumulator
        compiler_params=pltpu.CompilerParams(
            dimension_semantics=("parallel",),
            vmem_limit_bytes=int(vmem_limit),
        ),
    )(*args)


def transformer_forward(x_lnd, params, n_head, attn_mask=None,
                        compute_dtype=jnp.bfloat16):
    """Stack of ResidualAttentionBlocks.  x_lnd: (seq, batch, d_model) (PyTorch LND)."""
    S, B, D = x_lnd.shape
    assert D % n_head == 0
    in_dtype = x_lnd.dtype
    # bf16 inter-layer residual stream (f32 math inside the kernel).
    x = jnp.transpose(x_lnd, (1, 0, 2)).astype(jnp.bfloat16)   # -> (B, S, D)
    mask = None if attn_mask is None else attn_mask.astype(jnp.float32)

    hidden = params[0]["wfc"].shape[0]
    mlp_chunk = _pick_mlp_chunk(hidden)
    vmem_limit = _vmem_limit_bytes(S, D, hidden, mlp_chunk, mask is not None)

    for p in params:
        prep = _prepare_params(p, n_head, compute_dtype)
        x = _resblock(x, mask, prep, n_head, mlp_chunk, vmem_limit)
    return jnp.transpose(x, (1, 0, 2)).astype(in_dtype)        # back to (seq, batch, D)


# ----------------------------- pure-JAX reference -----------------------------

def _ref_layernorm(x, w, b):
    mu = jnp.mean(x, axis=-1, keepdims=True)
    var = jnp.mean((x - mu) ** 2, axis=-1, keepdims=True)
    return (x - mu) / jnp.sqrt(var + _EPS) * w + b


def reference_forward(x_lnd, params, n_head, attn_mask=None):
    """f32 reference matching the PyTorch module semantics."""
    S, B, D = x_lnd.shape
    hd = D // n_head
    x = jnp.transpose(x_lnd, (1, 0, 2)).astype(jnp.float32)    # (B, S, D)
    mask = jnp.zeros((S, S), jnp.float32) if attn_mask is None else attn_mask.astype(jnp.float32)
    for p in params:
        h = _ref_layernorm(x, p["ln1_w"][0], p["ln1_b"][0])
        qkv = jnp.einsum("bsd,ed->bse", h, p["wqkv"]) + p["bqkv"][0]
        q, k, v = jnp.split(qkv, 3, axis=-1)
        q = q.reshape(B, S, n_head, hd).transpose(0, 2, 1, 3) / jnp.sqrt(hd)
        k = k.reshape(B, S, n_head, hd).transpose(0, 2, 1, 3)
        v = v.reshape(B, S, n_head, hd).transpose(0, 2, 1, 3)
        s = jnp.einsum("bhqd,bhkd->bhqk", q, k) + mask
        a = jax.nn.softmax(s, axis=-1)
        ctx = jnp.einsum("bhqk,bhkd->bhqd", a, v).transpose(0, 2, 1, 3).reshape(B, S, D)
        x = x + jnp.einsum("bsd,ed->bse", ctx, p["wo"]) + p["bo"][0]
        h2 = _ref_layernorm(x, p["ln2_w"][0], p["ln2_b"][0])
        fc = jnp.einsum("bsd,hd->bsh", h2, p["wfc"]) + p["bfc"][0]
        g = 0.5 * fc * (1.0 + lax.erf(fc * (2.0 ** -0.5)))
        x = x + jnp.einsum("bsh,dh->bsd", g, p["wproj"]) + p["bproj"][0]
    return jnp.transpose(x, (1, 0, 2))


def init_params(key, width, layers, mlp_ratio=4.0):
    """Deterministic synthetic parameters matching the nn.Module shapes (torch layout)."""
    mlp_width = int(width * mlp_ratio)
    params = []
    for _ in range(layers):
        key, k0, k1, k2, k3 = jax.random.split(key, 5)
        params.append(dict(
            ln1_w=jnp.ones((1, width), jnp.float32),
            ln1_b=jnp.zeros((1, width), jnp.float32),
            wqkv=0.02 * jax.random.normal(k0, (3 * width, width), jnp.float32),
            bqkv=jnp.zeros((1, 3 * width), jnp.float32),
            wo=0.02 * jax.random.normal(k1, (width, width), jnp.float32),
            bo=jnp.zeros((1, width), jnp.float32),
            ln2_w=jnp.ones((1, width), jnp.float32),
            ln2_b=jnp.zeros((1, width), jnp.float32),
            wfc=0.02 * jax.random.normal(k2, (mlp_width, width), jnp.float32),
            bfc=jnp.zeros((1, mlp_width), jnp.float32),
            wproj=0.02 * jax.random.normal(k3, (width, mlp_width), jnp.float32),
            bproj=jnp.zeros((1, width), jnp.float32),
        ))
    return params


if __name__ == "__main__":
    width, layers, heads = 32, 2, 4
    seq_len, batch = 8, 2

    key = jax.random.PRNGKey(0)
    kx, kp = jax.random.split(key)
    x = jax.random.normal(kx, (seq_len, batch, width), jnp.float32)   # LND, like PyTorch
    params = init_params(kp, width, layers)

    y = transformer_forward(x, params, heads, attn_mask=None)
    y = jax.block_until_ready(y)
    assert y.shape == (seq_len, batch, width)
    assert bool(jnp.all(jnp.isfinite(y)))

    # Cross-check against the f32 pure-JAX reference (kernel uses bf16 matmuls and a
    # bf16 inter-layer residual stream, so tolerance is set accordingly).
    y_ref = reference_forward(x, params, heads, attn_mask=None)
    err = float(jnp.max(jnp.abs(y.astype(jnp.float32) - y_ref)))
    assert err < 1e-1, f"kernel deviates from reference: max abs err = {err}"
    print("KERNEL_OK")
</pallas_src>

<mosaic_0001>
module attributes {stable_mosaic.version = 11 : i64} {
  func.func @resblock_kernel(%arg0: i32, %arg1: memref<1x8x32xbf16, #tpu.memory_space<vmem>>, %arg2: memref<1x32xf32, #tpu.memory_space<vmem>>, %arg3: memref<1x32xf32, #tpu.memory_space<vmem>>, %arg4: memref<32x96xbf16, #tpu.memory_space<vmem>>, %arg5: memref<1x96xf32, #tpu.memory_space<vmem>>, %arg6: memref<32x32xbf16, #tpu.memory_space<vmem>>, %arg7: memref<1x32xf32, #tpu.memory_space<vmem>>, %arg8: memref<1x32xf32, #tpu.memory_space<vmem>>, %arg9: memref<1x32xf32, #tpu.memory_space<vmem>>, %arg10: memref<32x128xbf16, #tpu.memory_space<vmem>>, %arg11: memref<1x128xf32, #tpu.memory_space<vmem>>, %arg12: memref<128x32xbf16, #tpu.memory_space<vmem>>, %arg13: memref<1x32xf32, #tpu.memory_space<vmem>>, %arg14: memref<1x8x32xbf16, #tpu.memory_space<vmem>>, %arg15: memref<8x32xbf16, #tpu.memory_space<vmem>>) attributes {dimension_semantics = [#tpu.dimension_semantics<parallel>], iteration_bounds = array<i64: 2>, scalar_prefetch = 0 : i64, scratch_operands = 1 : i64, tpu.core_type = #tpu.core_type<tc>, window_params = [{transform_indices = @transform_0, window_bounds = array<i64: 1, 8, 32>}, {pipeline_mode = #tpu.pipeline_mode<synchronous>, transform_indices = @transform_1, window_bounds = array<i64: 1, 32>}, {pipeline_mode = #tpu.pipeline_mode<synchronous>, transform_indices = @transform_2, window_bounds = array<i64: 1, 32>}, {pipeline_mode = #tpu.pipeline_mode<synchronous>, transform_indices = @transform_3, window_bounds = array<i64: 32, 96>}, {pipeline_mode = #tpu.pipeline_mode<synchronous>, transform_indices = @transform_4, window_bounds = array<i64: 1, 96>}, {pipeline_mode = #tpu.pipeline_mode<synchronous>, transform_indices = @transform_5, window_bounds = array<i64: 32, 32>}, {pipeline_mode = #tpu.pipeline_mode<synchronous>, transform_indices = @transform_6, window_bounds = array<i64: 1, 32>}, {pipeline_mode = #tpu.pipeline_mode<synchronous>, transform_indices = @transform_7, window_bounds = array<i64: 1, 32>}, {pipeline_mode = #tpu.pipeline_mode<synchronous>, transform_indices = @transform_8, window_bounds = array<i64: 1, 32>}, {pipeline_mode = #tpu.pipeline_mode<synchronous>, transform_indices = @transform_9, window_bounds = array<i64: 32, 128>}, {pipeline_mode = #tpu.pipeline_mode<synchronous>, transform_indices = @transform_10, window_bounds = array<i64: 1, 128>}, {pipeline_mode = #tpu.pipeline_mode<synchronous>, transform_indices = @transform_11, window_bounds = array<i64: 128, 32>}, {pipeline_mode = #tpu.pipeline_mode<synchronous>, transform_indices = @transform_12, window_bounds = array<i64: 1, 32>}, {transform_indices = @transform_13, window_bounds = array<i64: 1, 8, 32>}]} {
    %c0 = arith.constant 0 : index
    %c0_0 = arith.constant 0 : index
    %c0_1 = arith.constant 0 : index
    %0 = vector.load %arg1[%c0, %c0_0, %c0_1] : memref<1x8x32xbf16, #tpu.memory_space<vmem>>, vector<1x8x32xbf16>
    %1 = vector.shape_cast %0 : vector<1x8x32xbf16> to vector<8x32xbf16>
    %2 = arith.extf %1 : vector<8x32xbf16> to vector<8x32xf32>
    %c0_2 = arith.constant 0 : index
    %c0_3 = arith.constant 0 : index
    %3 = vector.load %arg2[%c0_2, %c0_3] : memref<1x32xf32, #tpu.memory_space<vmem>>, vector<1x32xf32>
    %c0_4 = arith.constant 0 : index
    %c0_5 = arith.constant 0 : index
    %4 = vector.load %arg3[%c0_4, %c0_5] : memref<1x32xf32, #tpu.memory_space<vmem>>, vector<1x32xf32>
    %cst = arith.constant dense<0.000000e+00> : vector<8xf32>
    %5 = vector.multi_reduction <add>, %2, %cst [1] : vector<8x32xf32> to vector<8xf32>
    %6 = vector.shape_cast %5 : vector<8xf32> to vector<8x1xf32>
    %cst_6 = arith.constant 3.200000e+01 : f32
    %7 = vector.broadcast %cst_6 : f32 to vector<8x1xf32>
    %8 = arith.divf %6, %7 : vector<8x1xf32>
    %9 = vector.broadcast %8 : vector<8x1xf32> to vector<8x32xf32>
    %10 = arith.subf %2, %9 : vector<8x32xf32>
    %11 = arith.mulf %10, %10 : vector<8x32xf32>
    %cst_7 = arith.constant dense<0.000000e+00> : vector<8xf32>
    %12 = vector.multi_reduction <add>, %11, %cst_7 [1] : vector<8x32xf32> to vector<8xf32>
    %13 = vector.shape_cast %12 : vector<8xf32> to vector<8x1xf32>
    %cst_8 = arith.constant 3.200000e+01 : f32
    %14 = vector.broadcast %cst_8 : f32 to vector<8x1xf32>
    %15 = arith.divf %13, %14 : vector<8x1xf32>
    %16 = vector.broadcast %8 : vector<8x1xf32> to vector<8x32xf32>
    %17 = arith.subf %2, %16 : vector<8x32xf32>
    %cst_9 = arith.constant 9.99999974E-6 : f32
    %18 = vector.broadcast %cst_9 : f32 to vector<8x1xf32>
    %19 = arith.addf %15, %18 : vector<8x1xf32>
    %20 = math.rsqrt %19 : vector<8x1xf32>
    %21 = vector.broadcast %20 : vector<8x1xf32> to vector<8x32xf32>
    %22 = arith.mulf %17, %21 : vector<8x32xf32>
    %23 = vector.broadcast %3 : vector<1x32xf32> to vector<8x32xf32>
    %24 = arith.mulf %22, %23 : vector<8x32xf32>
    %25 = vector.broadcast %4 : vector<1x32xf32> to vector<8x32xf32>
    %26 = arith.addf %24, %25 : vector<8x32xf32>
    %27 = arith.truncf %26 : vector<8x32xf32> to vector<8x32xbf16>
    %c0_10 = arith.constant 0 : index
    %c0_11 = arith.constant 0 : index
    %28 = vector.load %arg4[%c0_10, %c0_11] : memref<32x96xbf16, #tpu.memory_space<vmem>>, vector<32x96xbf16>
    %cst_12 = arith.constant dense<0.000000e+00> : vector<8x96xf32>
    %29 = tpu.matmul %27, %28, %cst_12 {dimension_numbers = #tpu.dot_dimension_numbers<[1], [0], [0], [1], [0, 0, 1, 1], [], []>} : vector<8x32xbf16>, vector<32x96xbf16>, vector<8x96xf32> -> vector<8x96xf32>
    %c0_13 = arith.constant 0 : index
    %c0_14 = arith.constant 0 : index
    %30 = vector.load %arg5[%c0_13, %c0_14] : memref<1x96xf32, #tpu.memory_space<vmem>>, vector<1x96xf32>
    %31 = vector.broadcast %30 : vector<1x96xf32> to vector<8x96xf32>
    %32 = arith.addf %29, %31 : vector<8x96xf32>
    %33 = arith.truncf %32 : vector<8x96xf32> to vector<8x96xbf16>
    %34 = vector.extract_strided_slice %33 {offsets = [0, 0], sizes = [8, 8], strides = [1, 1]} : vector<8x96xbf16> to vector<8x8xbf16>
    %35 = vector.extract_strided_slice %33 {offsets = [0, 32], sizes = [8, 8], strides = [1, 1]} : vector<8x96xbf16> to vector<8x8xbf16>
    %36 = vector.extract_strided_slice %33 {offsets = [0, 64], sizes = [8, 8], strides = [1, 1]} : vector<8x96xbf16> to vector<8x8xbf16>
    %cst_15 = arith.constant dense<0.000000e+00> : vector<8x8xf32>
    %37 = tpu.matmul %34, %35, %cst_15 {dimension_numbers = #tpu.dot_dimension_numbers<[1], [1], [0], [0], [0, 0, 1, 0], [], []>} : vector<8x8xbf16>, vector<8x8xbf16>, vector<8x8xf32> -> vector<8x8xf32>
    %cst_16 = arith.constant dense<0xFF800000> : vector<8xf32>
    %38 = vector.multi_reduction <maximumf>, %37, %cst_16 [1] : vector<8x8xf32> to vector<8xf32>
    %39 = vector.shape_cast %38 : vector<8xf32> to vector<8x1xf32>
    %40 = vector.broadcast %39 : vector<8x1xf32> to vector<8x8xf32>
    %41 = arith.subf %37, %40 : vector<8x8xf32>
    %42 = math.exp %41 : vector<8x8xf32>
    %cst_17 = arith.constant dense<0.000000e+00> : vector<8xf32>
    %43 = vector.multi_reduction <add>, %42, %cst_17 [1] : vector<8x8xf32> to vector<8xf32>
    %44 = vector.shape_cast %43 : vector<8xf32> to vector<8x1xf32>
    %45 = tpu.reciprocal %44 {approx = true} : vector<8x1xf32> -> vector<8x1xf32>
    %46 = vector.broadcast %45 : vector<8x1xf32> to vector<8x8xf32>
    %47 = arith.mulf %42, %46 : vector<8x8xf32>
    %48 = arith.truncf %47 : vector<8x8xf32> to vector<8x8xbf16>
    %cst_18 = arith.constant dense<0.000000e+00> : vector<8x8xf32>
    %49 = tpu.matmul %48, %36, %cst_18 {dimension_numbers = #tpu.dot_dimension_numbers<[1], [0], [0], [1], [0, 0, 1, 1], [], []>} : vector<8x8xbf16>, vector<8x8xbf16>, vector<8x8xf32> -> vector<8x8xf32>
    %50 = arith.truncf %49 : vector<8x8xf32> to vector<8x8xbf16>
    %c0_19 = arith.constant 0 : index
    %c0_20 = arith.constant 0 : index
    %51 = vector.load %arg15[%c0_19, %c0_20] : memref<8x32xbf16, #tpu.memory_space<vmem>>, vector<8x8xbf16>
    tpu.vector_store %arg15[%c0_19, %c0_20], %50 {strides = array<i32>} : memref<8x32xbf16, #tpu.memory_space<vmem>>, vector<8x8xbf16>,
    %52 = vector.extract_strided_slice %33 {offsets = [0, 8], sizes = [8, 8], strides = [1, 1]} : vector<8x96xbf16> to vector<8x8xbf16>
    %53 = vector.extract_strided_slice %33 {offsets = [0, 40], sizes = [8, 8], strides = [1, 1]} : vector<8x96xbf16> to vector<8x8xbf16>
    %54 = vector.extract_strided_slice %33 {offsets = [0, 72], sizes = [8, 8], strides = [1, 1]} : vector<8x96xbf16> to vector<8x8xbf16>
    %cst_21 = arith.constant dense<0.000000e+00> : vector<8x8xf32>
    %55 = tpu.matmul %52, %53, %cst_21 {dimension_numbers = #tpu.dot_dimension_numbers<[1], [1], [0], [0], [0, 0, 1, 0], [], []>} : vector<8x8xbf16>, vector<8x8xbf16>, vector<8x8xf32> -> vector<8x8xf32>
    %cst_22 = arith.constant dense<0xFF800000> : vector<8xf32>
    %56 = vector.multi_reduction <maximumf>, %55, %cst_22 [1] : vector<8x8xf32> to vector<8xf32>
    %57 = vector.shape_cast %56 : vector<8xf32> to vector<8x1xf32>
    %58 = vector.broadcast %57 : vector<8x1xf32> to vector<8x8xf32>
    %59 = arith.subf %55, %58 : vector<8x8xf32>
    %60 = math.exp %59 : vector<8x8xf32>
    %cst_23 = arith.constant dense<0.000000e+00> : vector<8xf32>
    %61 = vector.multi_reduction <add>, %60, %cst_23 [1] : vector<8x8xf32> to vector<8xf32>
    %62 = vector.shape_cast %61 : vector<8xf32> to vector<8x1xf32>
    %63 = tpu.reciprocal %62 {approx = true} : vector<8x1xf32> -> vector<8x1xf32>
    %64 = vector.broadcast %63 : vector<8x1xf32> to vector<8x8xf32>
    %65 = arith.mulf %60, %64 : vector<8x8xf32>
    %66 = arith.truncf %65 : vector<8x8xf32> to vector<8x8xbf16>
    %cst_24 = arith.constant dense<0.000000e+00> : vector<8x8xf32>
    %67 = tpu.matmul %66, %54, %cst_24 {dimension_numbers = #tpu.dot_dimension_numbers<[1], [0], [0], [1], [0, 0, 1, 1], [], []>} : vector<8x8xbf16>, vector<8x8xbf16>, vector<8x8xf32> -> vector<8x8xf32>
    %68 = arith.truncf %67 : vector<8x8xf32> to vector<8x8xbf16>
    %c0_25 = arith.constant 0 : index
    %c8 = arith.constant 8 : index
    %69 = vector.load %arg15[%c0_25, %c8] : memref<8x32xbf16, #tpu.memory_space<vmem>>, vector<8x8xbf16>
    tpu.vector_store %arg15[%c0_25, %c8], %68 {strides = array<i32>} : memref<8x32xbf16, #tpu.memory_space<vmem>>, vector<8x8xbf16>,
    %70 = vector.extract_strided_slice %33 {offsets = [0, 16], sizes = [8, 8], strides = [1, 1]} : vector<8x96xbf16> to vector<8x8xbf16>
    %71 = vector.extract_strided_slice %33 {offsets = [0, 48], sizes = [8, 8], strides = [1, 1]} : vector<8x96xbf16> to vector<8x8xbf16>
    %72 = vector.extract_strided_slice %33 {offsets = [0, 80], sizes = [8, 8], strides = [1, 1]} : vector<8x96xbf16> to vector<8x8xbf16>
    %cst_26 = arith.constant dense<0.000000e+00> : vector<8x8xf32>
    %73 = tpu.matmul %70, %71, %cst_26 {dimension_numbers = #tpu.dot_dimension_numbers<[1], [1], [0], [0], [0, 0, 1, 0], [], []>} : vector<8x8xbf16>, vector<8x8xbf16>, vector<8x8xf32> -> vector<8x8xf32>
    %cst_27 = arith.constant dense<0xFF800000> : vector<8xf32>
    %74 = vector.multi_reduction <maximumf>, %73, %cst_27 [1] : vector<8x8xf32> to vector<8xf32>
    %75 = vector.shape_cast %74 : vector<8xf32> to vector<8x1xf32>
    %76 = vector.broadcast %75 : vector<8x1xf32> to vector<8x8xf32>
    %77 = arith.subf %73, %76 : vector<8x8xf32>
    %78 = math.exp %77 : vector<8x8xf32>
    %cst_28 = arith.constant dense<0.000000e+00> : vector<8xf32>
    %79 = vector.multi_reduction <add>, %78, %cst_28 [1] : vector<8x8xf32> to vector<8xf32>
    %80 = vector.shape_cast %79 : vector<8xf32> to vector<8x1xf32>
    %81 = tpu.reciprocal %80 {approx = true} : vector<8x1xf32> -> vector<8x1xf32>
    %82 = vector.broadcast %81 : vector<8x1xf32> to vector<8x8xf32>
    %83 = arith.mulf %78, %82 : vector<8x8xf32>
    %84 = arith.truncf %83 : vector<8x8xf32> to vector<8x8xbf16>
    %cst_29 = arith.constant dense<0.000000e+00> : vector<8x8xf32>
    %85 = tpu.matmul %84, %72, %cst_29 {dimension_numbers = #tpu.dot_dimension_numbers<[1], [0], [0], [1], [0, 0, 1, 1], [], []>} : vector<8x8xbf16>, vector<8x8xbf16>, vector<8x8xf32> -> vector<8x8xf32>
    %86 = arith.truncf %85 : vector<8x8xf32> to vector<8x8xbf16>
    %c0_30 = arith.constant 0 : index
    %c16 = arith.constant 16 : index
    %87 = vector.load %arg15[%c0_30, %c16] : memref<8x32xbf16, #tpu.memory_space<vmem>>, vector<8x8xbf16>
    tpu.vector_store %arg15[%c0_30, %c16], %86 {strides = array<i32>} : memref<8x32xbf16, #tpu.memory_space<vmem>>, vector<8x8xbf16>,
    %88 = vector.extract_strided_slice %33 {offsets = [0, 24], sizes = [8, 8], strides = [1, 1]} : vector<8x96xbf16> to vector<8x8xbf16>
    %89 = vector.extract_strided_slice %33 {offsets = [0, 56], sizes = [8, 8], strides = [1, 1]} : vector<8x96xbf16> to vector<8x8xbf16>
    %90 = vector.extract_strided_slice %33 {offsets = [0, 88], sizes = [8, 8], strides = [1, 1]} : vector<8x96xbf16> to vector<8x8xbf16>
    %cst_31 = arith.constant dense<0.000000e+00> : vector<8x8xf32>
    %91 = tpu.matmul %88, %89, %cst_31 {dimension_numbers = #tpu.dot_dimension_numbers<[1], [1], [0], [0], [0, 0, 1, 0], [], []>} : vector<8x8xbf16>, vector<8x8xbf16>, vector<8x8xf32> -> vector<8x8xf32>
    %cst_32 = arith.constant dense<0xFF800000> : vector<8xf32>
    %92 = vector.multi_reduction <maximumf>, %91, %cst_32 [1] : vector<8x8xf32> to vector<8xf32>
    %93 = vector.shape_cast %92 : vector<8xf32> to vector<8x1xf32>
    %94 = vector.broadcast %93 : vector<8x1xf32> to vector<8x8xf32>
    %95 = arith.subf %91, %94 : vector<8x8xf32>
    %96 = math.exp %95 : vector<8x8xf32>
    %cst_33 = arith.constant dense<0.000000e+00> : vector<8xf32>
    %97 = vector.multi_reduction <add>, %96, %cst_33 [1] : vector<8x8xf32> to vector<8xf32>
    %98 = vector.shape_cast %97 : vector<8xf32> to vector<8x1xf32>
    %99 = tpu.reciprocal %98 {approx = true} : vector<8x1xf32> -> vector<8x1xf32>
    %100 = vector.broadcast %99 : vector<8x1xf32> to vector<8x8xf32>
    %101 = arith.mulf %96, %100 : vector<8x8xf32>
    %102 = arith.truncf %101 : vector<8x8xf32> to vector<8x8xbf16>
    %cst_34 = arith.constant dense<0.000000e+00> : vector<8x8xf32>
    %103 = tpu.matmul %102, %90, %cst_34 {dimension_numbers = #tpu.dot_dimension_numbers<[1], [0], [0], [1], [0, 0, 1, 1], [], []>} : vector<8x8xbf16>, vector<8x8xbf16>, vector<8x8xf32> -> vector<8x8xf32>
    %104 = arith.truncf %103 : vector<8x8xf32> to vector<8x8xbf16>
    %c0_35 = arith.constant 0 : index
    %c24 = arith.constant 24 : index
    %105 = vector.load %arg15[%c0_35, %c24] : memref<8x32xbf16, #tpu.memory_space<vmem>>, vector<8x8xbf16>
    tpu.vector_store %arg15[%c0_35, %c24], %104 {strides = array<i32>} : memref<8x32xbf16, #tpu.memory_space<vmem>>, vector<8x8xbf16>,
    %c0_36 = arith.constant 0 : index
    %c0_37 = arith.constant 0 : index
    %106 = vector.load %arg15[%c0_36, %c0_37] : memref<8x32xbf16, #tpu.memory_space<vmem>>, vector<8x32xbf16>
    %c0_38 = arith.constant 0 : index
    %c0_39 = arith.constant 0 : index
    %107 = vector.load %arg6[%c0_38, %c0_39] : memref<32x32xbf16, #tpu.memory_space<vmem>>, vector<32x32xbf16>
    %cst_40 = arith.constant dense<0.000000e+00> : vector<8x32xf32>
    %108 = tpu.matmul %106, %107, %cst_40 {dimension_numbers = #tpu.dot_dimension_numbers<[1], [0], [0], [1], [0, 0, 1, 1], [], []>} : vector<8x32xbf16>, vector<32x32xbf16>, vector<8x32xf32> -> vector<8x32xf32>
    %c0_41 = arith.constant 0 : index
    %c0_42 = arith.constant 0 : index
    %109 = vector.load %arg7[%c0_41, %c0_42] : memref<1x32xf32, #tpu.memory_space<vmem>>, vector<1x32xf32>
    %110 = vector.broadcast %109 : vector<1x32xf32> to vector<8x32xf32>
    %111 = arith.addf %108, %110 : vector<8x32xf32>
    %112 = arith.addf %2, %111 : vector<8x32xf32>
    %c0_43 = arith.constant 0 : index
    %c0_44 = arith.constant 0 : index
    %113 = vector.load %arg8[%c0_43, %c0_44] : memref<1x32xf32, #tpu.memory_space<vmem>>, vector<1x32xf32>
    %c0_45 = arith.constant 0 : index
    %c0_46 = arith.constant 0 : index
    %114 = vector.load %arg9[%c0_45, %c0_46] : memref<1x32xf32, #tpu.memory_space<vmem>>, vector<1x32xf32>
    %cst_47 = arith.constant dense<0.000000e+00> : vector<8xf32>
    %115 = vector.multi_reduction <add>, %112, %cst_47 [1] : vector<8x32xf32> to vector<8xf32>
    %116 = vector.shape_cast %115 : vector<8xf32> to vector<8x1xf32>
    %cst_48 = arith.constant 3.200000e+01 : f32
    %117 = vector.broadcast %cst_48 : f32 to vector<8x1xf32>
    %118 = arith.divf %116, %117 : vector<8x1xf32>
    %119 = vector.broadcast %118 : vector<8x1xf32> to vector<8x32xf32>
    %120 = arith.subf %112, %119 : vector<8x32xf32>
    %121 = arith.mulf %120, %120 : vector<8x32xf32>
    %cst_49 = arith.constant dense<0.000000e+00> : vector<8xf32>
    %122 = vector.multi_reduction <add>, %121, %cst_49 [1] : vector<8x32xf32> to vector<8xf32>
    %123 = vector.shape_cast %122 : vector<8xf32> to vector<8x1xf32>
    %cst_50 = arith.constant 3.200000e+01 : f32
    %124 = vector.broadcast %cst_50 : f32 to vector<8x1xf32>
    %125 = arith.divf %123, %124 : vector<8x1xf32>
    %126 = vector.broadcast %118 : vector<8x1xf32> to vector<8x32xf32>
    %127 = arith.subf %112, %126 : vector<8x32xf32>
    %cst_51 = arith.constant 9.99999974E-6 : f32
    %128 = vector.broadcast %cst_51 : f32 to vector<8x1xf32>
    %129 = arith.addf %125, %128 : vector<8x1xf32>
    %130 = math.rsqrt %129 : vector<8x1xf32>
    %131 = vector.broadcast %130 : vector<8x1xf32> to vector<8x32xf32>
    %132 = arith.mulf %127, %131 : vector<8x32xf32>
    %133 = vector.broadcast %113 : vector<1x32xf32> to vector<8x32xf32>
    %134 = arith.mulf %132, %133 : vector<8x32xf32>
    %135 = vector.broadcast %114 : vector<1x32xf32> to vector<8x32xf32>
    %136 = arith.addf %134, %135 : vector<8x32xf32>
    %137 = arith.truncf %136 : vector<8x32xf32> to vector<8x32xbf16>
    %cst_52 = arith.constant 0.000000e+00 : f32
    %138 = vector.broadcast %cst_52 : f32 to vector<8x32xf32>
    %c0_i32 = arith.constant 0 : i32
    %c128_i32 = arith.constant 128 : i32
    %139 = arith.muli %c0_i32, %c128_i32 : i32
    %140 = tpu.assume_multiple %139, 128 : i32
    %c0_53 = arith.constant 0 : index
    %141 = arith.index_cast %140 : i32 to index
    %142 = vector.load %arg10[%c0_53, %141] : memref<32x128xbf16, #tpu.memory_space<vmem>>, vector<32x128xbf16>
    %cst_54 = arith.constant dense<0.000000e+00> : vector<8x128xf32>
    %143 = tpu.matmul %137, %142, %cst_54 {dimension_numbers = #tpu.dot_dimension_numbers<[1], [0], [0], [1], [0, 0, 1, 1], [], []>} : vector<8x32xbf16>, vector<32x128xbf16>, vector<8x128xf32> -> vector<8x128xf32>
    %c0_55 = arith.constant 0 : index
    %144 = arith.index_cast %140 : i32 to index
    %145 = vector.load %arg11[%c0_55, %144] : memref<1x128xf32, #tpu.memory_space<vmem>>, vector<1x128xf32>
    %146 = vector.broadcast %145 : vector<1x128xf32> to vector<8x128xf32>
    %147 = arith.addf %143, %146 : vector<8x128xf32>
    %cst_56 = arith.constant 5.000000e-01 : f32
    %148 = vector.broadcast %cst_56 : f32 to vector<8x128xf32>
    %149 = arith.mulf %148, %147 : vector<8x128xf32>
    %cst_57 = arith.constant 0.707106769 : f32
    %150 = vector.broadcast %cst_57 : f32 to vector<8x128xf32>
    %151 = arith.mulf %147, %150 : vector<8x128xf32>
    %152 = math.erf %151 : vector<8x128xf32>
    %cst_58 = arith.constant 1.000000e+00 : f32
    %153 = vector.broadcast %cst_58 : f32 to vector<8x128xf32>
    %154 = arith.addf %153, %152 : vector<8x128xf32>
    %155 = arith.mulf %149, %154 : vector<8x128xf32>
    %156 = arith.truncf %155 : vector<8x128xf32> to vector<8x128xbf16>
    %157 = arith.index_cast %140 : i32 to index
    %c0_59 = arith.constant 0 : index
    %158 = vector.load %arg12[%157, %c0_59] : memref<128x32xbf16, #tpu.memory_space<vmem>>, vector<128x32xbf16>
    %cst_60 = arith.constant dense<0.000000e+00> : vector<8x32xf32>
    %159 = tpu.matmul %156, %158, %cst_60 {dimension_numbers = #tpu.dot_dimension_numbers<[1], [0], [0], [1], [0, 0, 1, 1], [], []>} : vector<8x128xbf16>, vector<128x32xbf16>, vector<8x32xf32> -> vector<8x32xf32>
    %160 = arith.addf %138, %159 : vector<8x32xf32>
    %c1_i32 = arith.constant 1 : i32
    %c0_61 = arith.constant 0 : index
    %c0_62 = arith.constant 0 : index
    %161 = vector.load %arg13[%c0_61, %c0_62] : memref<1x32xf32, #tpu.memory_space<vmem>>, vector<1x32xf32>
    %162 = vector.broadcast %161 : vector<1x32xf32> to vector<8x32xf32>
    %163 = arith.addf %160, %162 : vector<8x32xf32>
    %164 = arith.addf %112, %163 : vector<8x32xf32>
    %165 = arith.truncf %164 : vector<8x32xf32> to vector<8x32xbf16>
    %c0_63 = arith.constant 0 : index
    %c0_64 = arith.constant 0 : index
    %c0_65 = arith.constant 0 : index
    %166 = vector.load %arg14[%c0_63, %c0_64, %c0_65] : memref<1x8x32xbf16, #tpu.memory_space<vmem>>, vector<1x8x32xbf16>
    %167 = vector.shape_cast %166 : vector<1x8x32xbf16> to vector<8x32xbf16>
    %168 = vector.shape_cast %165 : vector<8x32xbf16> to vector<1x8x32xbf16>
    tpu.vector_store %arg14[%c0_63, %c0_64, %c0_65], %168 {strides = array<i32>} : memref<1x8x32xbf16, #tpu.memory_space<vmem>>, vector<1x8x32xbf16>,
    return
  }
  func.func @transform_0(%arg0: i32) -> (i32, i32, i32) {
    %c0_i32 = arith.constant 0 : i32
    %c0_i32_0 = arith.constant 0 : i32
    %c0_i32_1 = arith.constant 0 : i32
    return %arg0, %c0_i32, %c0_i32_0 : i32, i32, i32
  }
  func.func @transform_1(%arg0: i32) -> (i32, i32) {
    %c0_i32 = arith.constant 0 : i32
    %c0_i32_0 = arith.constant 0 : i32
    %c0_i32_1 = arith.constant 0 : i32
    return %c0_i32, %c0_i32_0 : i32, i32
  }
  func.func @transform_2(%arg0: i32) -> (i32, i32) {
    %c0_i32 = arith.constant 0 : i32
    %c0_i32_0 = arith.constant 0 : i32
    %c0_i32_1 = arith.constant 0 : i32
    return %c0_i32, %c0_i32_0 : i32, i32
  }
  func.func @transform_3(%arg0: i32) -> (i32, i32) {
    %c0_i32 = arith.constant 0 : i32
    %c0_i32_0 = arith.constant 0 : i32
    %c0_i32_1 = arith.constant 0 : i32
    return %c0_i32, %c0_i32_0 : i32, i32
  }
  func.func @transform_4(%arg0: i32) -> (i32, i32) {
    %c0_i32 = arith.constant 0 : i32
    %c0_i32_0 = arith.constant 0 : i32
    %c0_i32_1 = arith.constant 0 : i32
    return %c0_i32, %c0_i32_0 : i32, i32
  }
  func.func @transform_5(%arg0: i32) -> (i32, i32) {
    %c0_i32 = arith.constant 0 : i32
    %c0_i32_0 = arith.constant 0 : i32
    %c0_i32_1 = arith.constant 0 : i32
    return %c0_i32, %c0_i32_0 : i32, i32
  }
  func.func @transform_6(%arg0: i32) -> (i32, i32) {
    %c0_i32 = arith.constant 0 : i32
    %c0_i32_0 = arith.constant 0 : i32
    %c0_i32_1 = arith.constant 0 : i32
    return %c0_i32, %c0_i32_0 : i32, i32
  }
  func.func @transform_7(%arg0: i32) -> (i32, i32) {
    %c0_i32 = arith.constant 0 : i32
    %c0_i32_0 = arith.constant 0 : i32
    %c0_i32_1 = arith.constant 0 : i32
    return %c0_i32, %c0_i32_0 : i32, i32
  }
  func.func @transform_8(%arg0: i32) -> (i32, i32) {
    %c0_i32 = arith.constant 0 : i32
    %c0_i32_0 = arith.constant 0 : i32
    %c0_i32_1 = arith.constant 0 : i32
    return %c0_i32, %c0_i32_0 : i32, i32
  }
  func.func @transform_9(%arg0: i32) -> (i32, i32) {
    %c0_i32 = arith.constant 0 : i32
    %c0_i32_0 = arith.constant 0 : i32
    %c0_i32_1 = arith.constant 0 : i32
    return %c0_i32, %c0_i32_0 : i32, i32
  }
  func.func @transform_10(%arg0: i32) -> (i32, i32) {
    %c0_i32 = arith.constant 0 : i32
    %c0_i32_0 = arith.constant 0 : i32
    %c0_i32_1 = arith.constant 0 : i32
    return %c0_i32, %c0_i32_0 : i32, i32
  }
  func.func @transform_11(%arg0: i32) -> (i32, i32) {
    %c0_i32 = arith.constant 0 : i32
    %c0_i32_0 = arith.constant 0 : i32
    %c0_i32_1 = arith.constant 0 : i32
    return %c0_i32, %c0_i32_0 : i32, i32
  }
  func.func @transform_12(%arg0: i32) -> (i32, i32) {
    %c0_i32 = arith.constant 0 : i32
    %c0_i32_0 = arith.constant 0 : i32
    %c0_i32_1 = arith.constant 0 : i32
    return %c0_i32, %c0_i32_0 : i32, i32
  }
  func.func @transform_13(%arg0: i32) -> (i32, i32, i32) {
    %c0_i32 = arith.constant 0 : i32
    %c0_i32_0 = arith.constant 0 : i32
    %c0_i32_1 = arith.constant 0 : i32
    return %arg0, %c0_i32, %c0_i32_0 : i32, i32, i32
  }
}

</mosaic_0001>

<llo_original>
// kernel: tpu_custom_call.1
$region0: #{tpu_custom_call.1}
  #allocation0 [shape = 'u32[]', space=smem, size = 0x4, offset = 0x4, fixed_abs, tag = 'smem constant byte address 0x4 - core index']
  #allocation1 [shape = 'u32[144,128]{1,0:T(1,128)}', space=vmem, size = 0x12000, scoped, tag = 'internal scratch']
  #allocation2 [shape = 'bf16[8,32]{1,0:T(8,128)(2,1)}', space=vmem, size = 0x800, scoped, tag = 'scratch operand']
  %s0 = inlined_call_operand.vmem [shape: bf16[2,8,32], index: 0, kind: input, shape index: {}]
  %s1 = inlined_call_operand.vmem [shape: f32[1,32], index: 1, kind: input, shape index: {}]
  %s2 = inlined_call_operand.vmem [shape: f32[1,32], index: 2, kind: input, shape index: {}]
  %s3 = inlined_call_operand.vmem [shape: bf16[32,96], index: 3, kind: input, shape index: {}]
  %s4 = inlined_call_operand.vmem [shape: f32[1,96], index: 4, kind: input, shape index: {}]
  %s5 = inlined_call_operand.vmem [shape: bf16[32,32], index: 5, kind: input, shape index: {}]
  %s6 = inlined_call_operand.vmem [shape: f32[1,32], index: 6, kind: input, shape index: {}]
  %s7 = inlined_call_operand.vmem [shape: f32[1,32], index: 7, kind: input, shape index: {}]
  %s8 = inlined_call_operand.vmem [shape: f32[1,32], index: 8, kind: input, shape index: {}]
  %s9 = inlined_call_operand.vmem [shape: bf16[32,128], index: 9, kind: input, shape index: {}]
  %s10 = inlined_call_operand.vmem [shape: f32[1,128], index: 10, kind: input, shape index: {}]
  %s11 = inlined_call_operand.vmem [shape: bf16[128,32], index: 11, kind: input, shape index: {}]
  %s12 = inlined_call_operand.vmem [shape: f32[1,32], index: 12, kind: input, shape index: {}]
  %s13 = inlined_call_operand.hbm [shape: bf16[2,8,32], index: 13, kind: output, shape index: {}]
  %s14 = sld [smem:[#allocation0]]
  $region85: #{tpu_custom_call.1} parent=0
    _
  %s16 = ssub.s32 1, %s14
  %s17 = scalar_select 0, %s16, %s14
  $region1: #{tpu_custom_call.1} parent=0
    #allocation3 [shape = 'u8[4096]{0}', space=vmem, size = 0x1000, scoped, tag = 'output window, operand 0']
    #allocation4 [shape = 's32[2]{0}', space=sflag, size = 0x8, scoped, tag = 'scoped memory for tpu_custom_call.1']
    %18 = vsyncpa [#allocation4], 0
    %s19 = scalar_lea.sflag [#allocation4], 1
    %20 = vsyncpa %s19, 0
    loop: start=0, step=1, limit=4
    $region2: #{tpu_custom_call.1} parent=1 // loop_pre_header
      _
    $region3: #{tpu_custom_call.1} parent=1 // loop_header
      %s22 = sphi 0, %s26
      %p23 = scmp.ge.s32.totalorder %s22, 4
      %s32 = sphi 0, %s34
      %s35 = sphi 0, %s32
      %s36 = sphi 0, %s35
      %s52 = sphi 0, %s36
      %s56 = sphi 0, %s56
      %s58 = sphi 0, %s56
      %s59 = sphi 0, %s58
      %s73 = sphi 0, %s59
      %s77 = sphi 0, %s77
      %s79 = sphi 0, %s77
      %s80 = sphi 0, %s79
      %s94 = sphi 0, %s80
      %s98 = sphi 0, %s98
      %s100 = sphi 0, %s98
      %s101 = sphi 0, %s100
      %s115 = sphi 0, %s101
      %s119 = sphi 0, %s119
      %s121 = sphi 0, %s119
      %s122 = sphi 0, %s121
      %s136 = sphi 0, %s122
      %s140 = sphi 0, %s140
      %s142 = sphi 0, %s140
      %s143 = sphi 0, %s142
      %s157 = sphi 0, %s143
      %s161 = sphi 0, %s161
      %s163 = sphi 0, %s161
      %s164 = sphi 0, %s163
      %s178 = sphi 0, %s164
      %s182 = sphi 0, %s182
      %s184 = sphi 0, %s182
      %s185 = sphi 0, %s184
      %s199 = sphi 0, %s185
      %s203 = sphi 0, %s203
      %s205 = sphi 0, %s203
      %s206 = sphi 0, %s205
      %s220 = sphi 0, %s206
      %s224 = sphi 0, %s224
      %s226 = sphi 0, %s224
      %s227 = sphi 0, %s226
      %s241 = sphi 0, %s227
      %s245 = sphi 0, %s245
      %s247 = sphi 0, %s245
      %s248 = sphi 0, %s247
      %s262 = sphi 0, %s248
      %s266 = sphi 0, %s266
      %s268 = sphi 0, %s266
      %s269 = sphi 0, %s268
      %s283 = sphi 0, %s269
      %s287 = sphi 0, %s287
      %s289 = sphi 0, %s287
      %s290 = sphi 0, %s289
      %s304 = sphi 0, %s290
      %s310 = sphi 0, %s312
      %s313 = sphi 0, %s310
      %s314 = sphi 0, %s313
      %s330 = sphi 0, %s314
    $region4: #{tpu_custom_call.1} parent=1 // loop_header_branch
      %25 = sbr.rel (%p23) target = $region8
    $region5: #{tpu_custom_call.1} parent=1 // loop_body
      %s27 = ssub.s32 %s22, 1
      %s28 = ssub.s32 %s22, 2
      %s29 = sadd.s32 %s22, 1
      %s30 = ssub.s32 %s22, %s29
      %p31 = scmp.eq.s32.totalorder %s30, 0
      %s33 = sadd.s32 %s32, 1
      %s34 = scalar_select %p31, %s32, %s33
      %p37 = pneg %p31
      %p38 = scmp.eq.s32.totalorder %s22, 1
      %p39 = por %p37, %p38
      %p40 = scmp.ne.s32.totalorder %s32, %s35
      %p41 = scmp.eq.s32.totalorder %s22, 0
      %p42 = por %p40, %p41
      %p43 = scmp.ne.s32.totalorder %s32, %s35
      %p44 = scmp.eq.s32.totalorder %s27, 1
      %p45 = por %p43, %p44
      %p46 = scmp.ne.s32.totalorder %s35, %s36
      %p47 = scmp.eq.s32.totalorder %s27, 0
      %p48 = por %p46, %p47
      %p49 = scmp.ne.s32.totalorder %s35, %s36
      %p50 = scmp.eq.s32.totalorder %s28, 1
      %p51 = por %p49, %p50
      %p53 = scmp.ne.s32.totalorder %s36, %s52
      %p54 = scmp.eq.s32.totalorder %s28, 0
      %p55 = por %p53, %p54
      %s57 = sadd.s32 %s56, 1
      %p60 = scmp.eq.s32.totalorder %s22, 1
      %p61 = scmp.ne.s32.totalorder %s56, %s58
      %p62 = scmp.eq.s32.totalorder %s22, 0
      %p63 = por %p61, %p62
      %p64 = scmp.ne.s32.totalorder %s56, %s58
      %p65 = scmp.eq.s32.totalorder %s27, 1
      %p66 = por %p64, %p65
      %p67 = scmp.ne.s32.totalorder %s58, %s59
      %p68 = scmp.eq.s32.totalorder %s27, 0
      %p69 = por %p67, %p68
      %p70 = scmp.ne.s32.totalorder %s58, %s59
      %p71 = scmp.eq.s32.totalorder %s28, 1
      %p72 = por %p70, %p71
      %p74 = scmp.ne.s32.totalorder %s59, %s73
      %p75 = scmp.eq.s32.totalorder %s28, 0
      %p76 = por %p74, %p75
      %s78 = sadd.s32 %s77, 1
      %p81 = scmp.eq.s32.totalorder %s22, 1
      %p82 = scmp.ne.s32.totalorder %s77, %s79
      %p83 = scmp.eq.s32.totalorder %s22, 0
      %p84 = por %p82, %p83
      %p85 = scmp.ne.s32.totalorder %s77, %s79
      %p86 = scmp.eq.s32.totalorder %s27, 1
      %p87 = por %p85, %p86
      %p88 = scmp.ne.s32.totalorder %s79, %s80
      %p89 = scmp.eq.s32.totalorder %s27, 0
      %p90 = por %p88, %p89
      %p91 = scmp.ne.s32.totalorder %s79, %s80
      %p92 = scmp.eq.s32.totalorder %s28, 1
      %p93 = por %p91, %p92
      %p95 = scmp.ne.s32.totalorder %s80, %s94
      %p96 = scmp.eq.s32.totalorder %s28, 0
      %p97 = por %p95, %p96
      %s99 = sadd.s32 %s98, 1
      %p102 = scmp.eq.s32.totalorder %s22, 1
      %p103 = scmp.ne.s32.totalorder %s98, %s100
      %p104 = scmp.eq.s32.totalorder %s22, 0
      %p105 = por %p103, %p104
      %p106 = scmp.ne.s32.totalorder %s98, %s100
      %p107 = scmp.eq.s32.totalorder %s27, 1
      %p108 = por %p106, %p107
      %p109 = scmp.ne.s32.totalorder %s100, %s101
      %p110 = scmp.eq.s32.totalorder %s27, 0
      %p111 = por %p109, %p110
      %p112 = scmp.ne.s32.totalorder %s100, %s101
      %p113 = scmp.eq.s32.totalorder %s28, 1
      %p114 = por %p112, %p113
      %p116 = scmp.ne.s32.totalorder %s101, %s115
      %p117 = scmp.eq.s32.totalorder %s28, 0
      %p118 = por %p116, %p117
      %s120 = sadd.s32 %s119, 1
      %p123 = scmp.eq.s32.totalorder %s22, 1
      %p124 = scmp.ne.s32.totalorder %s119, %s121
      %p125 = scmp.eq.s32.totalorder %s22, 0
      %p126 = por %p124, %p125
      %p127 = scmp.ne.s32.totalorder %s119, %s121
      %p128 = scmp.eq.s32.totalorder %s27, 1
      %p129 = por %p127, %p128
      %p130 = scmp.ne.s32.totalorder %s121, %s122
      %p131 = scmp.eq.s32.totalorder %s27, 0
      %p132 = por %p130, %p131
      %p133 = scmp.ne.s32.totalorder %s121, %s122
      %p134 = scmp.eq.s32.totalorder %s28, 1
      %p135 = por %p133, %p134
      %p137 = scmp.ne.s32.totalorder %s122, %s136
      %p138 = scmp.eq.s32.totalorder %s28, 0
      %p139 = por %p137, %p138
      %s141 = sadd.s32 %s140, 1
      %p144 = scmp.eq.s32.totalorder %s22, 1
      %p145 = scmp.ne.s32.totalorder %s140, %s142
      %p146 = scmp.eq.s32.totalorder %s22, 0
      %p147 = por %p145, %p146
      %p148 = scmp.ne.s32.totalorder %s140, %s142
      %p149 = scmp.eq.s32.totalorder %s27, 1
      %p150 = por %p148, %p149
      %p151 = scmp.ne.s32.totalorder %s142, %s143
      %p152 = scmp.eq.s32.totalorder %s27, 0
      %p153 = por %p151, %p152
      %p154 = scmp.ne.s32.totalorder %s142, %s143
      %p155 = scmp.eq.s32.totalorder %s28, 1
      %p156 = por %p154, %p155
      %p158 = scmp.ne.s32.totalorder %s143, %s157
      %p159 = scmp.eq.s32.totalorder %s28, 0
      %p160 = por %p158, %p159
      %s162 = sadd.s32 %s161, 1
      %p165 = scmp.eq.s32.totalorder %s22, 1
      %p166 = scmp.ne.s32.totalorder %s161, %s163
      %p167 = scmp.eq.s32.totalorder %s22, 0
      %p168 = por %p166, %p167
      %p169 = scmp.ne.s32.totalorder %s161, %s163
      %p170 = scmp.eq.s32.totalorder %s27, 1
      %p171 = por %p169, %p170
      %p172 = scmp.ne.s32.totalorder %s163, %s164
      %p173 = scmp.eq.s32.totalorder %s27, 0
      %p174 = por %p172, %p173
      %p175 = scmp.ne.s32.totalorder %s163, %s164
      %p176 = scmp.eq.s32.totalorder %s28, 1
      %p177 = por %p175, %p176
      %p179 = scmp.ne.s32.totalorder %s164, %s178
      %p180 = scmp.eq.s32.totalorder %s28, 0
      %p181 = por %p179, %p180
      %s183 = sadd.s32 %s182, 1
      %p186 = scmp.eq.s32.totalorder %s22, 1
      %p187 = scmp.ne.s32.totalorder %s182, %s184
      %p188 = scmp.eq.s32.totalorder %s22, 0
      %p189 = por %p187, %p188
      %p190 = scmp.ne.s32.totalorder %s182, %s184
      %p191 = scmp.eq.s32.totalorder %s27, 1
      %p192 = por %p190, %p191
      %p193 = scmp.ne.s32.totalorder %s184, %s185
      %p194 = scmp.eq.s32.totalorder %s27, 0
      %p195 = por %p193, %p194
      %p196 = scmp.ne.s32.totalorder %s184, %s185
      %p197 = scmp.eq.s32.totalorder %s28, 1
      %p198 = por %p196, %p197
      %p200 = scmp.ne.s32.totalorder %s185, %s199
      %p201 = scmp.eq.s32.totalorder %s28, 0
      %p202 = por %p200, %p201
      %s204 = sadd.s32 %s203, 1
      %p207 = scmp.eq.s32.totalorder %s22, 1
      %p208 = scmp.ne.s32.totalorder %s203, %s205
      %p209 = scmp.eq.s32.totalorder %s22, 0
      %p210 = por %p208, %p209
      %p211 = scmp.ne.s32.totalorder %s203, %s205
      %p212 = scmp.eq.s32.totalorder %s27, 1
      %p213 = por %p211, %p212
      %p214 = scmp.ne.s32.totalorder %s205, %s206
      %p215 = scmp.eq.s32.totalorder %s27, 0
      %p216 = por %p214, %p215
      %p217 = scmp.ne.s32.totalorder %s205, %s206
      %p218 = scmp.eq.s32.totalorder %s28, 1
      %p219 = por %p217, %p218
      %p221 = scmp.ne.s32.totalorder %s206, %s220
      %p222 = scmp.eq.s32.totalorder %s28, 0
      %p223 = por %p221, %p222
      %s225 = sadd.s32 %s224, 1
      %p228 = scmp.eq.s32.totalorder %s22, 1
      %p229 = scmp.ne.s32.totalorder %s224, %s226
      %p230 = scmp.eq.s32.totalorder %s22, 0
      %p231 = por %p229, %p230
      %p232 = scmp.ne.s32.totalorder %s224, %s226
      %p233 = scmp.eq.s32.totalorder %s27, 1
      %p234 = por %p232, %p233
      %p235 = scmp.ne.s32.totalorder %s226, %s227
      %p236 = scmp.eq.s32.totalorder %s27, 0
      %p237 = por %p235, %p236
      %p238 = scmp.ne.s32.totalorder %s226, %s227
      %p239 = scmp.eq.s32.totalorder %s28, 1
      %p240 = por %p238, %p239
      %p242 = scmp.ne.s32.totalorder %s227, %s241
      %p243 = scmp.eq.s32.totalorder %s28, 0
      %p244 = por %p242, %p243
      %s246 = sadd.s32 %s245, 1
      %p249 = scmp.eq.s32.totalorder %s22, 1
      %p250 = scmp.ne.s32.totalorder %s245, %s247
      %p251 = scmp.eq.s32.totalorder %s22, 0
      %p252 = por %p250, %p251
      %p253 = scmp.ne.s32.totalorder %s245, %s247
      %p254 = scmp.eq.s32.totalorder %s27, 1
      %p255 = por %p253, %p254
      %p256 = scmp.ne.s32.totalorder %s247, %s248
      %p257 = scmp.eq.s32.totalorder %s27, 0
      %p258 = por %p256, %p257
      %p259 = scmp.ne.s32.totalorder %s247, %s248
      %p260 = scmp.eq.s32.totalorder %s28, 1
      %p261 = por %p259, %p260
      %p263 = scmp.ne.s32.totalorder %s248, %s262
      %p264 = scmp.eq.s32.totalorder %s28, 0
      %p265 = por %p263, %p264
      %s267 = sadd.s32 %s266, 1
      %p270 = scmp.eq.s32.totalorder %s22, 1
      %p271 = scmp.ne.s32.totalorder %s266, %s268
      %p272 = scmp.eq.s32.totalorder %s22, 0
      %p273 = por %p271, %p272
      %p274 = scmp.ne.s32.totalorder %s266, %s268
      %p275 = scmp.eq.s32.totalorder %s27, 1
      %p276 = por %p274, %p275
      %p277 = scmp.ne.s32.totalorder %s268, %s269
      %p278 = scmp.eq.s32.totalorder %s27, 0
      %p279 = por %p277, %p278
      %p280 = scmp.ne.s32.totalorder %s268, %s269
      %p281 = scmp.eq.s32.totalorder %s28, 1
      %p282 = por %p280, %p281
      %p284 = scmp.ne.s32.totalorder %s269, %s283
      %p285 = scmp.eq.s32.totalorder %s28, 0
      %p286 = por %p284, %p285
      %s288 = sadd.s32 %s287, 1
      %p291 = scmp.eq.s32.totalorder %s22, 1
      %p292 = scmp.ne.s32.totalorder %s287, %s289
      %p293 = scmp.eq.s32.totalorder %s22, 0
      %p294 = por %p292, %p293
      %p295 = scmp.ne.s32.totalorder %s287, %s289
      %p296 = scmp.eq.s32.totalorder %s27, 1
      %p297 = por %p295, %p296
      %p298 = scmp.ne.s32.totalorder %s289, %s290
      %p299 = scmp.eq.s32.totalorder %s27, 0
      %p300 = por %p298, %p299
      %p301 = scmp.ne.s32.totalorder %s289, %s290
      %p302 = scmp.eq.s32.totalorder %s28, 1
      %p303 = por %p301, %p302
      %p305 = scmp.ne.s32.totalorder %s290, %s304
      %p306 = scmp.eq.s32.totalorder %s28, 0
      %p307 = por %p305, %p306
      %s308 = ssub.s32 %s22, %s29
      %p309 = scmp.eq.s32.totalorder %s308, 0
      %s311 = sadd.s32 %s310, 1
      %s312 = scalar_select %p309, %s310, %s311
      %p315 = pneg %p309
      %p316 = scmp.eq.s32.totalorder %s22, 1
      %p317 = por %p315, %p316
      %p318 = scmp.ne.s32.totalorder %s310, %s313
      %p319 = scmp.eq.s32.totalorder %s22, 0
      %p320 = por %p318, %p319
      %p321 = scmp.ne.s32.totalorder %s310, %s313
      %p322 = scmp.eq.s32.totalorder %s27, 1
      %p323 = por %p321, %p322
      %p324 = scmp.ne.s32.totalorder %s313, %s314
      %p325 = scmp.eq.s32.totalorder %s27, 0
      %p326 = por %p324, %p325
      %p327 = scmp.ne.s32.totalorder %s313, %s314
      %p328 = scmp.eq.s32.totalorder %s28, 1
      %p329 = por %p327, %p328
      %p331 = scmp.ne.s32.totalorder %s314, %s330
      %p332 = scmp.eq.s32.totalorder %s28, 0
      %p333 = por %p331, %p332
      %p334 = scmp.le.s32.totalorder 1, %s22
      %p335 = scmp.lt.s32.totalorder %s22, 3
      %p336 = pnand %p334, %p335
      %p337 = pneg %p336
      // Predicated region
      $region9: #{tpu_custom_call.1} parent=5 // pred_check
        _
      $region10: #{tpu_custom_call.1} parent=5 // pred_check_branch
        %339 = sbr.rel (%p336) target = $region12
      $region11: #{tpu_custom_call.1} parent=5 // pred_region
        %s340 = ssub.s32 %s22, 1
        // Predicated region
        $region13: #{tpu_custom_call.1} parent=11 // pred_check
          %p341 = pneg %p69
        $region14: #{tpu_custom_call.1} parent=11 // pred_check_branch
          %343 = sbr.rel (%p341) target = $region16
        $region15: #{tpu_custom_call.1} parent=11 // pred_region
          _
        $region16: #{tpu_custom_call.1} parent=11 // pred_fallthru
          _
        // Predicated region
        $region17: #{tpu_custom_call.1} parent=11 // pred_check
          %p344 = pneg %p90
        $region18: #{tpu_custom_call.1} parent=11 // pred_check_branch
          %346 = sbr.rel (%p344) target = $region20
        $region19: #{tpu_custom_call.1} parent=11 // pred_region
          _
        $region20: #{tpu_custom_call.1} parent=11 // pred_fallthru
          _
        // Predicated region
        $region21: #{tpu_custom_call.1} parent=11 // pred_check
          %p347 = pneg %p111
        $region22: #{tpu_custom_call.1} parent=11 // pred_check_branch
          %349 = sbr.rel (%p347) target = $region24
        $region23: #{tpu_custom_call.1} parent=11 // pred_region
          _
        $region24: #{tpu_custom_call.1} parent=11 // pred_fallthru
          _
        // Predicated region
        $region25: #{tpu_custom_call.1} parent=11 // pred_check
          %p350 = pneg %p132
        $region26: #{tpu_custom_call.1} parent=11 // pred_check_branch
          %352 = sbr.rel (%p350) target = $region28
        $region27: #{tpu_custom_call.1} parent=11 // pred_region
          _
        $region28: #{tpu_custom_call.1} parent=11 // pred_fallthru
          _
        // Predicated region
        $region29: #{tpu_custom_call.1} parent=11 // pred_check
          %p353 = pneg %p153
        $region30: #{tpu_custom_call.1} parent=11 // pred_check_branch
          %355 = sbr.rel (%p353) target = $region32
        $region31: #{tpu_custom_call.1} parent=11 // pred_region
          _
        $region32: #{tpu_custom_call.1} parent=11 // pred_fallthru
          _
        // Predicated region
        $region33: #{tpu_custom_call.1} parent=11 // pred_check
          %p356 = pneg %p174
        $region34: #{tpu_custom_call.1} parent=11 // pred_check_branch
          %358 = sbr.rel (%p356) target = $region36
        $region35: #{tpu_custom_call.1} parent=11 // pred_region
          _
        $region36: #{tpu_custom_call.1} parent=11 // pred_fallthru
          _
        // Predicated region
        $region37: #{tpu_custom_call.1} parent=11 // pred_check
          %p359 = pneg %p195
        $region38: #{tpu_custom_call.1} parent=11 // pred_check_branch
          %361 = sbr.rel (%p359) target = $region40
        $region39: #{tpu_custom_call.1} parent=11 // pred_region
          _
        $region40: #{tpu_custom_call.1} parent=11 // pred_fallthru
          _
        // Predicated region
        $region41: #{tpu_custom_call.1} parent=11 // pred_check
          %p362 = pneg %p216
        $region42: #{tpu_custom_call.1} parent=11 // pred_check_branch
          %364 = sbr.rel (%p362) target = $region44
        $region43: #{tpu_custom_call.1} parent=11 // pred_region
          _
        $region44: #{tpu_custom_call.1} parent=11 // pred_fallthru
          _
        // Predicated region
        $region45: #{tpu_custom_call.1} parent=11 // pred_check
          %p365 = pneg %p237
        $region46: #{tpu_custom_call.1} parent=11 // pred_check_branch
          %367 = sbr.rel (%p365) target = $region48
        $region47: #{tpu_custom_call.1} parent=11 // pred_region
          _
        $region48: #{tpu_custom_call.1} parent=11 // pred_fallthru
          _
        // Predicated region
        $region49: #{tpu_custom_call.1} parent=11 // pred_check
          %p368 = pneg %p258
        $region50: #{tpu_custom_call.1} parent=11 // pred_check_branch
          %370 = sbr.rel (%p368) target = $region52
        $region51: #{tpu_custom_call.1} parent=11 // pred_region
          _
        $region52: #{tpu_custom_call.1} parent=11 // pred_fallthru
          _
        // Predicated region
        $region53: #{tpu_custom_call.1} parent=11 // pred_check
          %p371 = pneg %p279
        $region54: #{tpu_custom_call.1} parent=11 // pred_check_branch
          %373 = sbr.rel (%p371) target = $region56
        $region55: #{tpu_custom_call.1} parent=11 // pred_region
          _
        $region56: #{tpu_custom_call.1} parent=11 // pred_fallthru
          _
        // Predicated region
        $region57: #{tpu_custom_call.1} parent=11 // pred_check
          %p374 = pneg %p300
        $region58: #{tpu_custom_call.1} parent=11 // pred_check_branch
          %376 = sbr.rel (%p374) target = $region60
        $region59: #{tpu_custom_call.1} parent=11 // pred_region
          _
        $region60: #{tpu_custom_call.1} parent=11 // pred_fallthru
          _
      $region12: #{tpu_custom_call.1} parent=5 // pred_fallthru
        _
      %p377 = scmp.lt.s32.totalorder %s22, 2
      // Predicated region
      $region61: #{tpu_custom_call.1} parent=5 // pred_check
        %p378 = pneg %p377
      $region62: #{tpu_custom_call.1} parent=5 // pred_check_branch
        %380 = sbr.rel (%p378) target = $region64
      $region63: #{tpu_custom_call.1} parent=5 // pred_region
        // Predicated region
        $region65: #{tpu_custom_call.1} parent=63 // pred_check
          %p381 = pneg %p42
        $region66: #{tpu_custom_call.1} parent=63 // pred_check_branch
          %383 = sbr.rel (%p381) target = $region68
        $region67: #{tpu_custom_call.1} parent=63 // pred_region
          %p384 = scmp.lt.s32.totalorder %s22, 1
          %s385 = scalar_select %p384, %s22, 1
          %s386 = smul.addr %s385, 4
          %s387 = scalar_lea.vmem %s0, %s386
        $region68: #{tpu_custom_call.1} parent=63 // pred_fallthru
          _
      $region64: #{tpu_custom_call.1} parent=5 // pred_fallthru
        _
      %p388 = scmp.le.s32.totalorder 1, %s22
      %p389 = scmp.lt.s32.totalorder %s22, 3
      %p390 = pnand %p388, %p389
      %p391 = pneg %p390
      // Predicated region
      $region69: #{tpu_custom_call.1} parent=5 // pred_check
        _
      $region70: #{tpu_custom_call.1} parent=5 // pred_check_branch
        %393 = sbr.rel (%p390) target = $region72
      $region71: #{tpu_custom_call.1} parent=5 // pred_region
        %s394 = ssub.s32 %s22, 1
        %p395 = scmp.lt.s32.totalorder %s27, 1
        %s396 = scalar_select %p395, %s27, 1
        %s397 = smul.addr %s396, 4
        %s398 = scalar_lea.vmem %s0, %s397
        %p399 = pneg %p48
        %p400 = pneg %p45
        %p401 = pneg %p69
        %p402 = pneg %p66
        %p403 = pneg %p90
        %p404 = pneg %p87
        %p405 = pneg %p111
        %p406 = pneg %p108
        %p407 = pneg %p132
        %p408 = pneg %p129
        %p409 = pneg %p153
        %p410 = pneg %p150
        %p411 = pneg %p174
        %p412 = pneg %p171
        %p413 = pneg %p195
        %p414 = pneg %p192
        %p415 = pneg %p216
        %p416 = pneg %p213
        %p417 = pneg %p237
        %p418 = pneg %p234
        %p419 = pneg %p258
        %p420 = pneg %p255
        %p421 = pneg %p279
        %p422 = pneg %p276
        %p423 = pneg %p300
        %p424 = pneg %p297
        %p425 = pneg %p326
        %p426 = pneg %p323
        %s427 = sand.u32 %s313, 1
        %s428 = scalar_lea.sflag [#allocation4], %s427
        %s429 = sand.u32 %s313, 1
        %s430 = smul.addr %s429, 4
        %s431 = scalar_lea.vmem [#allocation3], %s430
        %p432 = scmp.lt.s32.totalorder %s27, 1
        %s433 = scalar_select %p432, %s27, 1
        %s434 = smul.addr %s433, 4
        %s435 = scalar_lea.vmem %s0, %s434
        %v437 = vld [vmem:[%s435] sm:$0xf]
        %v438 = vunpack.c.l.bf16 %v437
        %v439 = vld [vmem:[%s1] sm:$0x1]
        %v440 = vld [vmem:[%s2] sm:$0x1]
        %vm441 = vcmask 261120
        %v442 = vsel %vm441, %v438, 0.0
        %443 = vadd.xlane.f32.xlu0 %v442
        %v444 = vpop.xlane.xlu0 %443
        %v445 = vrcp.pop 32.0
        %v446 = vmul.f32 %v444, %v445
        %v447 = vsub.f32 %v438, %v446
        %v448 = vmul.f32 %v447, %v447
        %v449 = vsel %vm441, %v448, 0.0
        %450 = vadd.xlane.f32.xlu0 %v449
        %v451 = vpop.xlane.xlu0 %450
        %v452 = vmul.f32 %v451, %v445
        %v453 = vadd.f32 %v452, 1e-05
        %v454 = vrsqrt.pop %v453
        %v455 = vmul.f32 %v447, %v454
        %v457 = vlaneseq
        %v458 = vshrl.u32 %v457, 7
        %v459 = vsub.s32 0, %v458
        %v460 = vrot.slane %v439, %v459
        %v462 = vmul.f32 %v455, %v460
        %v464 = vlaneseq
        %v465 = vshrl.u32 %v464, 7
        %v466 = vsub.s32 0, %v465
        %v467 = vrot.slane %v440, %v466
        %v469 = vadd.f32 %v462, %v467
        %v470 = vpack.c.bf16 %v469, %v469
        %v471 = vld [vmem:[%s3] sm:$0xf]
        %v472 = vld [vmem:[%s3 + $0x4] sm:$0xf]
        %v473 = vld [vmem:[%s3 + $0x8] sm:$0xf]
        %v474 = vld [vmem:[%s3 + $0xc] sm:$0xf]
        %v475 = vld [vmem:[%s4] sm:$0x1]
        %v477 = vlaneseq
        %v478 = vshrl.u32 %v477, 7
        %v479 = vsub.s32 0, %v478
        %v480 = vrot.slane %v475, %v479
        %v486 = vunpack.c.l.b16 %v471
        %v487 = vunpack.c.l.b16 %v472
        %v488 = vunpack.c.l.b16 %v473
        %v489 = vunpack.c.l.b16 %v474
        %v490 = vpack.c.b16 %v487, %v486
        %v491 = vpack.c.b16 %v489, %v488
        %v495 = vsel %vm441, %v470, 0
        %497 = vmatprep.subr.bf16.mxu0 0
        %498 = vmatpush1.bf16.msra.mxu0 %v490
        %499 = vmatprep.subr.bf16.mxu0 0
        %500 = vmatpush1.bf16.msra.mxu0 %v491
        %501 = vmatprep.subr.bf16.mxu0 0
        %502 = vmatpush1.bf16.msra.mxu0 0
        %503 = vmatprep.subr.bf16.mxu0 0
        %504 = vmatpush1.bf16.msra.mxu0 0
        %505 = vmatprep.subr.bf16.mxu0 0
        %506 = vmatpush1.bf16.msra.mxu0 0
        %507 = vmatprep.subr.bf16.mxu0 0
        %508 = vmatpush1.bf16.msra.mxu0 0
        %509 = vmatprep.subr.bf16.mxu0 0
        %510 = vmatpush1.bf16.msra.mxu0 0
        %511 = vmatprep.subr.bf16.mxu0 0
        %512 = vmatpush1.bf16.msra.mxu0 0
        %513 = vmatprep.subr.bf16.mxu0 0
        %514 = vmatpush1.bf16.msra.mxu0 0
        %515 = vmatprep.subr.bf16.mxu0 0
        %516 = vmatpush1.bf16.msra.mxu0 0
        %517 = vmatprep.subr.bf16.mxu0 0
        %518 = vmatpush1.bf16.msra.mxu0 0
        %519 = vmatprep.subr.bf16.mxu0 0
        %520 = vmatpush1.bf16.msra.mxu0 0
        %521 = vmatprep.subr.bf16.mxu0 0
        %522 = vmatpush1.bf16.msra.mxu0 0
        %523 = vmatprep.subr.bf16.mxu0 0
        %524 = vmatpush1.bf16.msra.mxu0 0
        %525 = vmatprep.subr.bf16.mxu0 0
        %526 = vmatpush1.bf16.msra.mxu0 0
        %527 = vmatprep.subr.bf16.mxu0 0
        %528 = vmatpush1.bf16.msra.mxu0 0
        %529 = vmatprep.mubr.bf16.mxu0 0
        %530 = vmatmul.mubr.bf16.gmra.mrb[0].mxu0 %v495
        %v531 = vpop.f32.mrb[0].mxu0
        %v532 = vadd.f32 %v480, %v531
        %v533 = vpop.f32.mrb[0].mxu0
        %v534 = vpop.f32.mrb[0].mxu0
        %v535 = vpop.f32.mrb[0].mxu0
        %536 = vdwg.mxu0
        %v537 = vpack.c.bf16 %v532, %v532
        %539 = vrot.lane.b32.xlu0 %v537, 96
        %v540 = vpop.permute.xlu0 %539
        %vm541 = vcmask 64512
        %v543 = vsel %vm541, %v537, 0
        %v546 = vsel %vm541, %v540, 0
        %548 = vmatprep.subr.bf16.mxu0 0
        %549 = vmatpush1.bf16.xpose.msra.mxu0 %v546
        %550 = vmatprep.subr.bf16.mxu0 0
        %551 = vmatpush1.bf16.xpose.msra.mxu0 0
        %552 = vmatprep.subr.bf16.mxu0 0
        %553 = vmatpush1.bf16.xpose.msra.mxu0 0
        %554 = vmatprep.subr.bf16.mxu0 0
        %555 = vmatpush1.bf16.xpose.msra.mxu0 0
        %556 = vmatprep.subr.bf16.mxu0 0
        %557 = vmatpush1.bf16.xpose.msra.mxu0 0
        %558 = vmatprep.subr.bf16.mxu0 0
        %559 = vmatpush1.bf16.xpose.msra.mxu0 0
        %560 = vmatprep.subr.bf16.mxu0 0
        %561 = vmatpush1.bf16.xpose.msra.mxu0 0
        %562 = vmatprep.subr.bf16.mxu0 0
        %563 = vmatpush1.bf16.xpose.msra.mxu0 0
        %564 = vmatprep.subr.bf16.mxu0 0
        %565 = vmatpush1.bf16.xpose.msra.mxu0 0
        %566 = vmatprep.subr.bf16.mxu0 0
        %567 = vmatpush1.bf16.xpose.msra.mxu0 0
        %568 = vmatprep.subr.bf16.mxu0 0
        %569 = vmatpush1.bf16.xpose.msra.mxu0 0
        %570 = vmatprep.subr.bf16.mxu0 0
        %571 = vmatpush1.bf16.xpose.msra.mxu0 0
        %572 = vmatprep.subr.bf16.mxu0 0
        %573 = vmatpush1.bf16.xpose.msra.mxu0 0
        %574 = vmatprep.subr.bf16.mxu0 0
        %575 = vmatpush1.bf16.xpose.msra.mxu0 0
        %576 = vmatprep.subr.bf16.mxu0 0
        %577 = vmatpush1.bf16.xpose.msra.mxu0 0
        %578 = vmatprep.subr.bf16.mxu0 0
        %579 = vmatpush1.bf16.xpose.msra.mxu0 0
        %580 = vmatprep.mubr.bf16.mxu0 0
        %581 = vmatmul.mubr.bf16.gmra.mrb[0].mxu0 %v543
        %v582 = vpop.f32.mrb[0].mxu0
        %v583 = vadd.f32 0.0, %v582
        %v584 = vpop.f32.mrb[0].mxu0
        %v585 = vpop.f32.mrb[0].mxu0
        %v586 = vpop.f32.mrb[0].mxu0
        %587 = vdwg.mxu0
        %v588 = vsel %vm541, %v583, -inf
        %589 = vmax.xlane.f32.xlu0 %v588
        %v590 = vpop.xlane.xlu0 %589
        %v591 = vsub.f32 %v583, %v590
        %v592 = vmul.f32 %v591, 1.442695
        %v593 = vpow.pop %v592
        %v594 = vsel %vm541, %v593, 0.0
        %595 = vadd.xlane.f32.xlu0 %v594
        %v596 = vpop.xlane.xlu0 %595
        %v597 = vrcp.pop %v596
        %v598 = vmul.f32 %v593, %v597
        %v599 = vpack.c.bf16 %v598, %v598
        %600 = vrot.lane.b32.xlu0 %v537, 64
        %v601 = vpop.permute.xlu0 %600
        %v603 = vsel %vm541, %v599, 0
        %vm605 = vcmask 1043456
        %v607 = vsel %vm605, %v601, 0
        %609 = vmatprep.subr.bf16.mxu0 0
        %610 = vmatpush1.bf16.msra.mxu0 %v607
        %611 = vmatprep.subr.bf16.mxu0 0
        %612 = vmatpush1.bf16.msra.mxu0 0
        %613 = vmatprep.subr.bf16.mxu0 0
        %614 = vmatpush1.bf16.msra.mxu0 0
        %615 = vmatprep.subr.bf16.mxu0 0
        %616 = vmatpush1.bf16.msra.mxu0 0
        %617 = vmatprep.subr.bf16.mxu0 0
        %618 = vmatpush1.bf16.msra.mxu0 0
        %619 = vmatprep.subr.bf16.mxu0 0
        %620 = vmatpush1.bf16.msra.mxu0 0
        %621 = vmatprep.subr.bf16.mxu0 0
        %622 = vmatpush1.bf16.msra.mxu0 0
        %623 = vmatprep.subr.bf16.mxu0 0
        %624 = vmatpush1.bf16.msra.mxu0 0
        %625 = vmatprep.subr.bf16.mxu0 0
        %626 = vmatpush1.bf16.msra.mxu0 0
        %627 = vmatprep.subr.bf16.mxu0 0
        %628 = vmatpush1.bf16.msra.mxu0 0
        %629 = vmatprep.subr.bf16.mxu0 0
        %630 = vmatpush1.bf16.msra.mxu0 0
        %631 = vmatprep.subr.bf16.mxu0 0
        %632 = vmatpush1.bf16.msra.mxu0 0
        %633 = vmatprep.subr.bf16.mxu0 0
        %634 = vmatpush1.bf16.msra.mxu0 0
        %635 = vmatprep.subr.bf16.mxu0 0
        %636 = vmatpush1.bf16.msra.mxu0 0
        %637 = vmatprep.subr.bf16.mxu0 0
        %638 = vmatpush1.bf16.msra.mxu0 0
        %639 = vmatprep.subr.bf16.mxu0 0
        %640 = vmatpush1.bf16.msra.mxu0 0
        %641 = vmatprep.mubr.bf16.mxu0 0
        %642 = vmatmul.mubr.bf16.gmra.mrb[0].mxu0 %v603
        %v643 = vpop.f32.mrb[0].mxu0
        %v644 = vadd.f32 0.0, %v643
        %v645 = vpop.f32.mrb[0].mxu0
        %v646 = vpop.f32.mrb[0].mxu0
        %v647 = vpop.f32.mrb[0].mxu0
        %648 = vdwg.mxu0
        %v649 = vpack.c.bf16 %v644, %v644
        %vm650 = vcmask 60416
        %651 = vst.msk [vmem:[#allocation2] sm:$0xf] %vm650, %v649
        %652 = vrot.lane.b32.xlu0 %v537, 120
        %v653 = vpop.permute.xlu0 %652
        %654 = vrot.lane.b32.xlu0 %v537, 88
        %v655 = vpop.permute.xlu0 %654
        %v657 = vsel %vm541, %v653, 0
        %v660 = vsel %vm541, %v655, 0
        %662 = vmatprep.subr.bf16.mxu0 0
        %663 = vmatpush1.bf16.xpose.msra.mxu0 %v660
        %664 = vmatprep.subr.bf16.mxu0 0
        %665 = vmatpush1.bf16.xpose.msra.mxu0 0
        %666 = vmatprep.subr.bf16.mxu0 0
        %667 = vmatpush1.bf16.xpose.msra.mxu0 0
        %668 = vmatprep.subr.bf16.mxu0 0
        %669 = vmatpush1.bf16.xpose.msra.mxu0 0
        %670 = vmatprep.subr.bf16.mxu0 0
        %671 = vmatpush1.bf16.xpose.msra.mxu0 0
        %672 = vmatprep.subr.bf16.mxu0 0
        %673 = vmatpush1.bf16.xpose.msra.mxu0 0
        %674 = vmatprep.subr.bf16.mxu0 0
        %675 = vmatpush1.bf16.xpose.msra.mxu0 0
        %676 = vmatprep.subr.bf16.mxu0 0
        %677 = vmatpush1.bf16.xpose.msra.mxu0 0
        %678 = vmatprep.subr.bf16.mxu0 0
        %679 = vmatpush1.bf16.xpose.msra.mxu0 0
        %680 = vmatprep.subr.bf16.mxu0 0
        %681 = vmatpush1.bf16.xpose.msra.mxu0 0
        %682 = vmatprep.subr.bf16.mxu0 0
        %683 = vmatpush1.bf16.xpose.msra.mxu0 0
        %684 = vmatprep.subr.bf16.mxu0 0
        %685 = vmatpush1.bf16.xpose.msra.mxu0 0
        %686 = vmatprep.subr.bf16.mxu0 0
        %687 = vmatpush1.bf16.xpose.msra.mxu0 0
        %688 = vmatprep.subr.bf16.mxu0 0
        %689 = vmatpush1.bf16.xpose.msra.mxu0 0
        %690 = vmatprep.subr.bf16.mxu0 0
        %691 = vmatpush1.bf16.xpose.msra.mxu0 0
        %692 = vmatprep.subr.bf16.mxu0 0
        %693 = vmatpush1.bf16.xpose.msra.mxu0 0
        %694 = vmatprep.mubr.bf16.mxu0 0
        %695 = vmatmul.mubr.bf16.gmra.mrb[0].mxu0 %v657
        %v696 = vpop.f32.mrb[0].mxu0
        %v697 = vadd.f32 0.0, %v696
        %v698 = vpop.f32.mrb[0].mxu0
        %v699 = vpop.f32.mrb[0].mxu0
        %v700 = vpop.f32.mrb[0].mxu0
        %701 = vdwg.mxu0
        %v702 = vsel %vm541, %v697, -inf
        %703 = vmax.xlane.f32.xlu0 %v702
        %v704 = vpop.xlane.xlu0 %703
        %v705 = vsub.f32 %v697, %v704
        %v706 = vmul.f32 %v705, 1.442695
        %v707 = vpow.pop %v706
        %v708 = vsel %vm541, %v707, 0.0
        %709 = vadd.xlane.f32.xlu0 %v708
        %v710 = vpop.xlane.xlu0 %709
        %v711 = vrcp.pop %v710
        %v712 = vmul.f32 %v707, %v711
        %v713 = vpack.c.bf16 %v712, %v712
        %714 = vrot.lane.b32.xlu0 %v537, 56
        %v715 = vpop.permute.xlu0 %714
        %v717 = vsel %vm541, %v713, 0
        %v720 = vsel %vm605, %v715, 0
        %722 = vmatprep.subr.bf16.mxu0 0
        %723 = vmatpush1.bf16.msra.mxu0 %v720
        %724 = vmatprep.subr.bf16.mxu0 0
        %725 = vmatpush1.bf16.msra.mxu0 0
        %726 = vmatprep.subr.bf16.mxu0 0
        %727 = vmatpush1.bf16.msra.mxu0 0
        %728 = vmatprep.subr.bf16.mxu0 0
        %729 = vmatpush1.bf16.msra.mxu0 0
        %730 = vmatprep.subr.bf16.mxu0 0
        %731 = vmatpush1.bf16.msra.mxu0 0
        %732 = vmatprep.subr.bf16.mxu0 0
        %733 = vmatpush1.bf16.msra.mxu0 0
        %734 = vmatprep.subr.bf16.mxu0 0
        %735 = vmatpush1.bf16.msra.mxu0 0
        %736 = vmatprep.subr.bf16.mxu0 0
        %737 = vmatpush1.bf16.msra.mxu0 0
        %738 = vmatprep.subr.bf16.mxu0 0
        %739 = vmatpush1.bf16.msra.mxu0 0
        %740 = vmatprep.subr.bf16.mxu0 0
        %741 = vmatpush1.bf16.msra.mxu0 0
        %742 = vmatprep.subr.bf16.mxu0 0
        %743 = vmatpush1.bf16.msra.mxu0 0
        %744 = vmatprep.subr.bf16.mxu0 0
        %745 = vmatpush1.bf16.msra.mxu0 0
        %746 = vmatprep.subr.bf16.mxu0 0
        %747 = vmatpush1.bf16.msra.mxu0 0
        %748 = vmatprep.subr.bf16.mxu0 0
        %749 = vmatpush1.bf16.msra.mxu0 0
        %750 = vmatprep.subr.bf16.mxu0 0
        %751 = vmatpush1.bf16.msra.mxu0 0
        %752 = vmatprep.subr.bf16.mxu0 0
        %753 = vmatpush1.bf16.msra.mxu0 0
        %754 = vmatprep.mubr.bf16.mxu0 0
        %755 = vmatmul.mubr.bf16.gmra.mrb[0].mxu0 %v717
        %v756 = vpop.f32.mrb[0].mxu0
        %v757 = vadd.f32 0.0, %v756
        %v758 = vpop.f32.mrb[0].mxu0
        %v759 = vpop.f32.mrb[0].mxu0
        %v760 = vpop.f32.mrb[0].mxu0
        %761 = vdwg.mxu0
        %v762 = vpack.c.bf16 %v757, %v757
        %v764 = vunpack.c.l.b16 %v762
        %v765 = vpack.c.b16 %v764, %v764
        %766 = vrot.lane.b32.xlu0 %v765, 8
        %v767 = vpop.permute.xlu0 %766
        %vm769 = vcmask 126016
        %770 = vst.msk [vmem:[#allocation2] sm:$0xf] %vm769, %v767
        %771 = vrot.lane.b32.xlu0 %v537, 112
        %v772 = vpop.permute.xlu0 %771
        %773 = vrot.lane.b32.xlu0 %v537, 80
        %v774 = vpop.permute.xlu0 %773
        %v776 = vsel %vm541, %v772, 0
        %v779 = vsel %vm541, %v774, 0
        %781 = vmatprep.subr.bf16.mxu0 0
        %782 = vmatpush1.bf16.xpose.msra.mxu0 %v779
        %783 = vmatprep.subr.bf16.mxu0 0
        %784 = vmatpush1.bf16.xpose.msra.mxu0 0
        %785 = vmatprep.subr.bf16.mxu0 0
        %786 = vmatpush1.bf16.xpose.msra.mxu0 0
        %787 = vmatprep.subr.bf16.mxu0 0
        %788 = vmatpush1.bf16.xpose.msra.mxu0 0
        %789 = vmatprep.subr.bf16.mxu0 0
        %790 = vmatpush1.bf16.xpose.msra.mxu0 0
        %791 = vmatprep.subr.bf16.mxu0 0
        %792 = vmatpush1.bf16.xpose.msra.mxu0 0
        %793 = vmatprep.subr.bf16.mxu0 0
        %794 = vmatpush1.bf16.xpose.msra.mxu0 0
        %795 = vmatprep.subr.bf16.mxu0 0
        %796 = vmatpush1.bf16.xpose.msra.mxu0 0
        %797 = vmatprep.subr.bf16.mxu0 0
        %798 = vmatpush1.bf16.xpose.msra.mxu0 0
        %799 = vmatprep.subr.bf16.mxu0 0
        %800 = vmatpush1.bf16.xpose.msra.mxu0 0
        %801 = vmatprep.subr.bf16.mxu0 0
        %802 = vmatpush1.bf16.xpose.msra.mxu0 0
        %803 = vmatprep.subr.bf16.mxu0 0
        %804 = vmatpush1.bf16.xpose.msra.mxu0 0
        %805 = vmatprep.subr.bf16.mxu0 0
        %806 = vmatpush1.bf16.xpose.msra.mxu0 0
        %807 = vmatprep.subr.bf16.mxu0 0
        %808 = vmatpush1.bf16.xpose.msra.mxu0 0
        %809 = vmatprep.subr.bf16.mxu0 0
        %810 = vmatpush1.bf16.xpose.msra.mxu0 0
        %811 = vmatprep.subr.bf16.mxu0 0
        %812 = vmatpush1.bf16.xpose.msra.mxu0 0
        %813 = vmatprep.mubr.bf16.mxu0 0
        %814 = vmatmul.mubr.bf16.gmra.mrb[0].mxu0 %v776
        %v815 = vpop.f32.mrb[0].mxu0
        %v816 = vadd.f32 0.0, %v815
        %v817 = vpop.f32.mrb[0].mxu0
        %v818 = vpop.f32.mrb[0].mxu0
        %v819 = vpop.f32.mrb[0].mxu0
        %820 = vdwg.mxu0
        %v821 = vsel %vm541, %v816, -inf
        %822 = vmax.xlane.f32.xlu0 %v821
        %v823 = vpop.xlane.xlu0 %822
        %v824 = vsub.f32 %v816, %v823
        %v825 = vmul.f32 %v824, 1.442695
        %v826 = vpow.pop %v825
        %v827 = vsel %vm541, %v826, 0.0
        %828 = vadd.xlane.f32.xlu0 %v827
        %v829 = vpop.xlane.xlu0 %828
        %v830 = vrcp.pop %v829
        %v831 = vmul.f32 %v826, %v830
        %v832 = vpack.c.bf16 %v831, %v831
        %833 = vrot.lane.b32.xlu0 %v537, 48
        %v834 = vpop.permute.xlu0 %833
        %v836 = vsel %vm541, %v832, 0
        %v839 = vsel %vm605, %v834, 0
        %841 = vmatprep.subr.bf16.mxu0 0
        %842 = vmatpush1.bf16.msra.mxu0 %v839
        %843 = vmatprep.subr.bf16.mxu0 0
        %844 = vmatpush1.bf16.msra.mxu0 0
        %845 = vmatprep.subr.bf16.mxu0 0
        %846 = vmatpush1.bf16.msra.mxu0 0
        %847 = vmatprep.subr.bf16.mxu0 0
        %848 = vmatpush1.bf16.msra.mxu0 0
        %849 = vmatprep.subr.bf16.mxu0 0
        %850 = vmatpush1.bf16.msra.mxu0 0
        %851 = vmatprep.subr.bf16.mxu0 0
        %852 = vmatpush1.bf16.msra.mxu0 0
        %853 = vmatprep.subr.bf16.mxu0 0
        %854 = vmatpush1.bf16.msra.mxu0 0
        %855 = vmatprep.subr.bf16.mxu0 0
        %856 = vmatpush1.bf16.msra.mxu0 0
        %857 = vmatprep.subr.bf16.mxu0 0
        %858 = vmatpush1.bf16.msra.mxu0 0
        %859 = vmatprep.subr.bf16.mxu0 0
        %860 = vmatpush1.bf16.msra.mxu0 0
        %861 = vmatprep.subr.bf16.mxu0 0
        %862 = vmatpush1.bf16.msra.mxu0 0
        %863 = vmatprep.subr.bf16.mxu0 0
        %864 = vmatpush1.bf16.msra.mxu0 0
        %865 = vmatprep.subr.bf16.mxu0 0
        %866 = vmatpush1.bf16.msra.mxu0 0
        %867 = vmatprep.subr.bf16.mxu0 0
        %868 = vmatpush1.bf16.msra.mxu0 0
        %869 = vmatprep.subr.bf16.mxu0 0
        %870 = vmatpush1.bf16.msra.mxu0 0
        %871 = vmatprep.subr.bf16.mxu0 0
        %872 = vmatpush1.bf16.msra.mxu0 0
        %873 = vmatprep.mubr.bf16.mxu0 0
        %874 = vmatmul.mubr.bf16.gmra.mrb[0].mxu0 %v836
        %v875 = vpop.f32.mrb[0].mxu0
        %v876 = vadd.f32 0.0, %v875
        %v877 = vpop.f32.mrb[0].mxu0
        %v878 = vpop.f32.mrb[0].mxu0
        %v879 = vpop.f32.mrb[0].mxu0
        %880 = vdwg.mxu0
        %v881 = vpack.c.bf16 %v876, %v876
        %v883 = vunpack.c.l.b16 %v881
        %v884 = vpack.c.b16 %v883, %v883
        %885 = vrot.lane.b32.xlu0 %v884, 16
        %v886 = vpop.permute.xlu0 %885
        %vm888 = vcmask 191616
        %889 = vst.msk [vmem:[#allocation2] sm:$0xf] %vm888, %v886
        %890 = vrot.lane.b32.xlu0 %v537, 104
        %v891 = vpop.permute.xlu0 %890
        %892 = vrot.lane.b32.xlu0 %v537, 72
        %v893 = vpop.permute.xlu0 %892
        %v895 = vsel %vm541, %v891, 0
        %v898 = vsel %vm541, %v893, 0
        %900 = vmatprep.subr.bf16.mxu0 0
        %901 = vmatpush1.bf16.xpose.msra.mxu0 %v898
        %902 = vmatprep.subr.bf16.mxu0 0
        %903 = vmatpush1.bf16.xpose.msra.mxu0 0
        %904 = vmatprep.subr.bf16.mxu0 0
        %905 = vmatpush1.bf16.xpose.msra.mxu0 0
        %906 = vmatprep.subr.bf16.mxu0 0
        %907 = vmatpush1.bf16.xpose.msra.mxu0 0
        %908 = vmatprep.subr.bf16.mxu0 0
        %909 = vmatpush1.bf16.xpose.msra.mxu0 0
        %910 = vmatprep.subr.bf16.mxu0 0
        %911 = vmatpush1.bf16.xpose.msra.mxu0 0
        %912 = vmatprep.subr.bf16.mxu0 0
        %913 = vmatpush1.bf16.xpose.msra.mxu0 0
        %914 = vmatprep.subr.bf16.mxu0 0
        %915 = vmatpush1.bf16.xpose.msra.mxu0 0
        %916 = vmatprep.subr.bf16.mxu0 0
        %917 = vmatpush1.bf16.xpose.msra.mxu0 0
        %918 = vmatprep.subr.bf16.mxu0 0
        %919 = vmatpush1.bf16.xpose.msra.mxu0 0
        %920 = vmatprep.subr.bf16.mxu0 0
        %921 = vmatpush1.bf16.xpose.msra.mxu0 0
        %922 = vmatprep.subr.bf16.mxu0 0
        %923 = vmatpush1.bf16.xpose.msra.mxu0 0
        %924 = vmatprep.subr.bf16.mxu0 0
        %925 = vmatpush1.bf16.xpose.msra.mxu0 0
        %926 = vmatprep.subr.bf16.mxu0 0
        %927 = vmatpush1.bf16.xpose.msra.mxu0 0
        %928 = vmatprep.subr.bf16.mxu0 0
        %929 = vmatpush1.bf16.xpose.msra.mxu0 0
        %930 = vmatprep.subr.bf16.mxu0 0
        %931 = vmatpush1.bf16.xpose.msra.mxu0 0
        %932 = vmatprep.mubr.bf16.mxu0 0
        %933 = vmatmul.mubr.bf16.gmra.mrb[0].mxu0 %v895
        %v934 = vpop.f32.mrb[0].mxu0
        %v935 = vadd.f32 0.0, %v934
        %v936 = vpop.f32.mrb[0].mxu0
        %v937 = vpop.f32.mrb[0].mxu0
        %v938 = vpop.f32.mrb[0].mxu0
        %939 = vdwg.mxu0
        %v940 = vsel %vm541, %v935, -inf
        %941 = vmax.xlane.f32.xlu0 %v940
        %v942 = vpop.xlane.xlu0 %941
        %v943 = vsub.f32 %v935, %v942
        %v944 = vmul.f32 %v943, 1.442695
        %v945 = vpow.pop %v944
        %v946 = vsel %vm541, %v945, 0.0
        %947 = vadd.xlane.f32.xlu0 %v946
        %v948 = vpop.xlane.xlu0 %947
        %v949 = vrcp.pop %v948
        %v950 = vmul.f32 %v945, %v949
        %v951 = vpack.c.bf16 %v950, %v950
        %952 = vrot.lane.b32.xlu0 %v537, 40
        %v953 = vpop.permute.xlu0 %952
        %v955 = vsel %vm541, %v951, 0
        %v958 = vsel %vm605, %v953, 0
        %960 = vmatprep.subr.bf16.mxu0 0
        %961 = vmatpush1.bf16.msra.mxu0 %v958
        %962 = vmatprep.subr.bf16.mxu0 0
        %963 = vmatpush1.bf16.msra.mxu0 0
        %964 = vmatprep.subr.bf16.mxu0 0
        %965 = vmatpush1.bf16.msra.mxu0 0
        %966 = vmatprep.subr.bf16.mxu0 0
        %967 = vmatpush1.bf16.msra.mxu0 0
        %968 = vmatprep.subr.bf16.mxu0 0
        %969 = vmatpush1.bf16.msra.mxu0 0
        %970 = vmatprep.subr.bf16.mxu0 0
        %971 = vmatpush1.bf16.msra.mxu0 0
        %972 = vmatprep.subr.bf16.mxu0 0
        %973 = vmatpush1.bf16.msra.mxu0 0
        %974 = vmatprep.subr.bf16.mxu0 0
        %975 = vmatpush1.bf16.msra.mxu0 0
        %976 = vmatprep.subr.bf16.mxu0 0
        %977 = vmatpush1.bf16.msra.mxu0 0
        %978 = vmatprep.subr.bf16.mxu0 0
        %979 = vmatpush1.bf16.msra.mxu0 0
        %980 = vmatprep.subr.bf16.mxu0 0
        %981 = vmatpush1.bf16.msra.mxu0 0
        %982 = vmatprep.subr.bf16.mxu0 0
        %983 = vmatpush1.bf16.msra.mxu0 0
        %984 = vmatprep.subr.bf16.mxu0 0
        %985 = vmatpush1.bf16.msra.mxu0 0
        %986 = vmatprep.subr.bf16.mxu0 0
        %987 = vmatpush1.bf16.msra.mxu0 0
        %988 = vmatprep.subr.bf16.mxu0 0
        %989 = vmatpush1.bf16.msra.mxu0 0
        %990 = vmatprep.subr.bf16.mxu0 0
        %991 = vmatpush1.bf16.msra.mxu0 0
        %992 = vmatprep.mubr.bf16.mxu0 0
        %993 = vmatmul.mubr.bf16.gmra.mrb[0].mxu0 %v955
        %v994 = vpop.f32.mrb[0].mxu0
        %v995 = vadd.f32 0.0, %v994
        %v996 = vpop.f32.mrb[0].mxu0
        %v997 = vpop.f32.mrb[0].mxu0
        %v998 = vpop.f32.mrb[0].mxu0
        %999 = vdwg.mxu0
        %v1000 = vpack.c.bf16 %v995, %v995
        %v1002 = vunpack.c.l.b16 %v1000
        %v1003 = vpack.c.b16 %v1002, %v1002
        %1004 = vrot.lane.b32.xlu0 %v1003, 24
        %v1005 = vpop.permute.xlu0 %1004
        %vm1007 = vcmask 257216
        %1008 = vst.msk [vmem:[#allocation2] sm:$0xf] %vm1007, %v1005
        %v1009 = vld [vmem:[#allocation2] sm:$0xf]
        %v1010 = vld [vmem:[%s5] sm:$0xf]
        %v1011 = vld [vmem:[%s5 + $0x4] sm:$0xf]
        %v1012 = vld [vmem:[%s5 + $0x8] sm:$0xf]
        %v1013 = vld [vmem:[%s5 + $0xc] sm:$0xf]
        %v1014 = vld [vmem:[%s6] sm:$0x1]
        %v1016 = vlaneseq
        %v1017 = vshrl.u32 %v1016, 7
        %v1018 = vsub.s32 0, %v1017
        %v1019 = vrot.slane %v1014, %v1018
        %v1025 = vunpack.c.l.b16 %v1010
        %v1026 = vunpack.c.l.b16 %v1011
        %v1027 = vunpack.c.l.b16 %v1012
        %v1028 = vunpack.c.l.b16 %v1013
        %v1029 = vpack.c.b16 %v1026, %v1025
        %v1030 = vpack.c.b16 %v1028, %v1027
        %v1034 = vsel %vm441, %v1009, 0
        %1036 = vmatprep.subr.bf16.mxu0 0
        %1037 = vmatpush1.bf16.msra.mxu0 %v1029
        %1038 = vmatprep.subr.bf16.mxu0 0
        %1039 = vmatpush1.bf16.msra.mxu0 %v1030
        %1040 = vmatprep.subr.bf16.mxu0 0
        %1041 = vmatpush1.bf16.msra.mxu0 0
        %1042 = vmatprep.subr.bf16.mxu0 0
        %1043 = vmatpush1.bf16.msra.mxu0 0
        %1044 = vmatprep.subr.bf16.mxu0 0
        %1045 = vmatpush1.bf16.msra.mxu0 0
        %1046 = vmatprep.subr.bf16.mxu0 0
        %1047 = vmatpush1.bf16.msra.mxu0 0
        %1048 = vmatprep.subr.bf16.mxu0 0
        %1049 = vmatpush1.bf16.msra.mxu0 0
        %1050 = vmatprep.subr.bf16.mxu0 0
        %1051 = vmatpush1.bf16.msra.mxu0 0
        %1052 = vmatprep.subr.bf16.mxu0 0
        %1053 = vmatpush1.bf16.msra.mxu0 0
        %1054 = vmatprep.subr.bf16.mxu0 0
        %1055 = vmatpush1.bf16.msra.mxu0 0
        %1056 = vmatprep.subr.bf16.mxu0 0
        %1057 = vmatpush1.bf16.msra.mxu0 0
        %1058 = vmatprep.subr.bf16.mxu0 0
        %1059 = vmatpush1.bf16.msra.mxu0 0
        %1060 = vmatprep.subr.bf16.mxu0 0
        %1061 = vmatpush1.bf16.msra.mxu0 0
        %1062 = vmatprep.subr.bf16.mxu0 0
        %1063 = vmatpush1.bf16.msra.mxu0 0
        %1064 = vmatprep.subr.bf16.mxu0 0
        %1065 = vmatpush1.bf16.msra.mxu0 0
        %1066 = vmatprep.subr.bf16.mxu0 0
        %1067 = vmatpush1.bf16.msra.mxu0 0
        %1068 = vmatprep.mubr.bf16.mxu0 0
        %1069 = vmatmul.mubr.bf16.gmra.mrb[0].mxu0 %v1034
        %v1070 = vpop.f32.mrb[0].mxu0
        %v1071 = vadd.f32 %v1019, %v1070
        %v1072 = vpop.f32.mrb[0].mxu0
        %v1073 = vpop.f32.mrb[0].mxu0
        %v1074 = vpop.f32.mrb[0].mxu0
        %1075 = vdwg.mxu0
        %v1076 = vadd.f32 %v438, %v1071
        %v1077 = vld [vmem:[%s7] sm:$0x1]
        %v1078 = vld [vmem:[%s8] sm:$0x1]
        %v1079 = vsel %vm441, %v1076, 0.0
        %1080 = vadd.xlane.f32.xlu0 %v1079
        %v1081 = vpop.xlane.xlu0 %1080
        %v1082 = vmul.f32 %v1081, %v445
        %v1083 = vsub.f32 %v1076, %v1082
        %v1084 = vmul.f32 %v1083, %v1083
        %v1085 = vsel %vm441, %v1084, 0.0
        %1086 = vadd.xlane.f32.xlu0 %v1085
        %v1087 = vpop.xlane.xlu0 %1086
        %v1088 = vmul.f32 %v1087, %v445
        %v1089 = vadd.f32 %v1088, 1e-05
        %v1090 = vrsqrt.pop %v1089
        %v1091 = vmul.f32 %v1083, %v1090
        %v1093 = vlaneseq
        %v1094 = vshrl.u32 %v1093, 7
        %v1095 = vsub.s32 0, %v1094
        %v1096 = vrot.slane %v1077, %v1095
        %v1098 = vmul.f32 %v1091, %v1096
        %v1100 = vlaneseq
        %v1101 = vshrl.u32 %v1100, 7
        %v1102 = vsub.s32 0, %v1101
        %v1103 = vrot.slane %v1078, %v1102
        %v1105 = vadd.f32 %v1098, %v1103
        %v1106 = vpack.c.bf16 %v1105, %v1105
        %v1107 = vld [vmem:[%s9] sm:$0xf]
        %v1108 = vld [vmem:[%s9 + $0x4] sm:$0xf]
        %v1109 = vld [vmem:[%s9 + $0x8] sm:$0xf]
        %v1110 = vld [vmem:[%s9 + $0xc] sm:$0xf]
        %v1111 = vld [vmem:[%s10] sm:$0x1]
        %v1113 = vlaneseq
        %v1114 = vshrl.u32 %v1113, 7
        %v1115 = vsub.s32 0, %v1114
        %v1116 = vrot.slane %v1111, %v1115
        %v1122 = vunpack.c.l.b16 %v1107
        %v1123 = vunpack.c.l.b16 %v1108
        %v1124 = vunpack.c.l.b16 %v1109
        %v1125 = vunpack.c.l.b16 %v1110
        %v1126 = vpack.c.b16 %v1123, %v1122
        %v1127 = vpack.c.b16 %v1125, %v1124
        %v1131 = vsel %vm441, %v1106, 0
        %1133 = vmatprep.subr.bf16.mxu0 0
        %1134 = vmatpush1.bf16.msra.mxu0 %v1126
        %1135 = vmatprep.subr.bf16.mxu0 0
        %1136 = vmatpush1.bf16.msra.mxu0 %v1127
        %1137 = vmatprep.subr.bf16.mxu0 0
        %1138 = vmatpush1.bf16.msra.mxu0 0
        %1139 = vmatprep.subr.bf16.mxu0 0
        %1140 = vmatpush1.bf16.msra.mxu0 0
        %1141 = vmatprep.subr.bf16.mxu0 0
        %1142 = vmatpush1.bf16.msra.mxu0 0
        %1143 = vmatprep.subr.bf16.mxu0 0
        %1144 = vmatpush1.bf16.msra.mxu0 0
        %1145 = vmatprep.subr.bf16.mxu0 0
        %1146 = vmatpush1.bf16.msra.mxu0 0
        %1147 = vmatprep.subr.bf16.mxu0 0
        %1148 = vmatpush1.bf16.msra.mxu0 0
        %1149 = vmatprep.subr.bf16.mxu0 0
        %1150 = vmatpush1.bf16.msra.mxu0 0
        %1151 = vmatprep.subr.bf16.mxu0 0
        %1152 = vmatpush1.bf16.msra.mxu0 0
        %1153 = vmatprep.subr.bf16.mxu0 0
        %1154 = vmatpush1.bf16.msra.mxu0 0
        %1155 = vmatprep.subr.bf16.mxu0 0
        %1156 = vmatpush1.bf16.msra.mxu0 0
        %1157 = vmatprep.subr.bf16.mxu0 0
        %1158 = vmatpush1.bf16.msra.mxu0 0
        %1159 = vmatprep.subr.bf16.mxu0 0
        %1160 = vmatpush1.bf16.msra.mxu0 0
        %1161 = vmatprep.subr.bf16.mxu0 0
        %1162 = vmatpush1.bf16.msra.mxu0 0
        %1163 = vmatprep.subr.bf16.mxu0 0
        %1164 = vmatpush1.bf16.msra.mxu0 0
        %1165 = vmatprep.mubr.bf16.mxu0 0
        %1166 = vmatmul.mubr.bf16.gmra.mrb[0].mxu0 %v1131
        %v1167 = vpop.f32.mrb[0].mxu0
        %v1168 = vadd.f32 %v1116, %v1167
        %v1169 = vpop.f32.mrb[0].mxu0
        %v1170 = vpop.f32.mrb[0].mxu0
        %v1171 = vpop.f32.mrb[0].mxu0
        %1172 = vdwg.mxu0
        %v1173 = vmul.f32 %v1168, 0.5
        %v1174 = vmul.f32 %v1168, 0.70710677
        %v1175 = verf.f32.pop %v1174
        %v1176 = vadd.f32 %v1175, 1.0
        %v1177 = vmul.f32 %v1173, %v1176
        %v1178 = vpack.c.bf16 %v1177, %v1177
        %v1179 = vld [vmem:[%s11] sm:$0xf]
        %v1180 = vld [vmem:[%s11 + $0x4] sm:$0xf]
        %v1181 = vld [vmem:[%s11 + $0x8] sm:$0xf]
        %v1182 = vld [vmem:[%s11 + $0xc] sm:$0xf]
        %v1183 = vld [vmem:[%s11 + $0x10] sm:$0xf]
        %v1184 = vld [vmem:[%s11 + $0x14] sm:$0xf]
        %v1185 = vld [vmem:[%s11 + $0x18] sm:$0xf]
        %v1186 = vld [vmem:[%s11 + $0x1c] sm:$0xf]
        %v1187 = vld [vmem:[%s11 + $0x20] sm:$0xf]
        %v1188 = vld [vmem:[%s11 + $0x24] sm:$0xf]
        %v1189 = vld [vmem:[%s11 + $0x28] sm:$0xf]
        %v1190 = vld [vmem:[%s11 + $0x2c] sm:$0xf]
        %v1191 = vld [vmem:[%s11 + $0x30] sm:$0xf]
        %v1192 = vld [vmem:[%s11 + $0x34] sm:$0xf]
        %v1193 = vld [vmem:[%s11 + $0x38] sm:$0xf]
        %v1194 = vld [vmem:[%s11 + $0x3c] sm:$0xf]
        %v1195 = vld [vmem:[%s12] sm:$0x1]
        %v1197 = vlaneseq
        %v1198 = vshrl.u32 %v1197, 7
        %v1199 = vsub.s32 0, %v1198
        %v1200 = vrot.slane %v1195, %v1199
        %v1218 = vunpack.c.l.b16 %v1179
        %v1219 = vunpack.c.l.b16 %v1180
        %v1220 = vunpack.c.l.b16 %v1181
        %v1221 = vunpack.c.l.b16 %v1182
        %v1222 = vunpack.c.l.b16 %v1183
        %v1223 = vunpack.c.l.b16 %v1184
        %v1224 = vunpack.c.l.b16 %v1185
        %v1225 = vunpack.c.l.b16 %v1186
        %v1226 = vunpack.c.l.b16 %v1187
        %v1227 = vunpack.c.l.b16 %v1188
        %v1228 = vunpack.c.l.b16 %v1189
        %v1229 = vunpack.c.l.b16 %v1190
        %v1230 = vunpack.c.l.b16 %v1191
        %v1231 = vunpack.c.l.b16 %v1192
        %v1232 = vunpack.c.l.b16 %v1193
        %v1233 = vunpack.c.l.b16 %v1194
        %v1234 = vpack.c.b16 %v1219, %v1218
        %v1235 = vpack.c.b16 %v1221, %v1220
        %v1236 = vpack.c.b16 %v1223, %v1222
        %v1237 = vpack.c.b16 %v1225, %v1224
        %v1238 = vpack.c.b16 %v1227, %v1226
        %v1239 = vpack.c.b16 %v1229, %v1228
        %v1240 = vpack.c.b16 %v1231, %v1230
        %v1241 = vpack.c.b16 %v1233, %v1232
        %1250 = vmatprep.subr.bf16.mxu0 0
        %1251 = vmatpush1.bf16.msra.mxu0 %v1234
        %1252 = vmatprep.subr.bf16.mxu0 0
        %1253 = vmatpush1.bf16.msra.mxu0 %v1235
        %1254 = vmatprep.subr.bf16.mxu0 0
        %1255 = vmatpush1.bf16.msra.mxu0 %v1236
        %1256 = vmatprep.subr.bf16.mxu0 0
        %1257 = vmatpush1.bf16.msra.mxu0 %v1237
        %1258 = vmatprep.subr.bf16.mxu0 0
        %1259 = vmatpush1.bf16.msra.mxu0 %v1238
        %1260 = vmatprep.subr.bf16.mxu0 0
        %1261 = vmatpush1.bf16.msra.mxu0 %v1239
        %1262 = vmatprep.subr.bf16.mxu0 0
        %1263 = vmatpush1.bf16.msra.mxu0 %v1240
        %1264 = vmatprep.subr.bf16.mxu0 0
        %1265 = vmatpush1.bf16.msra.mxu0 %v1241
        %1266 = vmatprep.subr.bf16.mxu0 0
        %1267 = vmatpush1.bf16.msra.mxu0 0
        %1268 = vmatprep.subr.bf16.mxu0 0
        %1269 = vmatpush1.bf16.msra.mxu0 0
        %1270 = vmatprep.subr.bf16.mxu0 0
        %1271 = vmatpush1.bf16.msra.mxu0 0
        %1272 = vmatprep.subr.bf16.mxu0 0
        %1273 = vmatpush1.bf16.msra.mxu0 0
        %1274 = vmatprep.subr.bf16.mxu0 0
        %1275 = vmatpush1.bf16.msra.mxu0 0
        %1276 = vmatprep.subr.bf16.mxu0 0
        %1277 = vmatpush1.bf16.msra.mxu0 0
        %1278 = vmatprep.subr.bf16.mxu0 0
        %1279 = vmatpush1.bf16.msra.mxu0 0
        %1280 = vmatprep.subr.bf16.mxu0 0
        %1281 = vmatpush1.bf16.msra.mxu0 0
        %1282 = vmatprep.mubr.bf16.mxu0 0
        %1283 = vmatmul.mubr.bf16.gmra.mrb[0].mxu0 %v1178
        %v1284 = vpop.f32.mrb[0].mxu0
        %v1285 = vadd.f32 %v1200, %v1284
        %v1286 = vpop.f32.mrb[0].mxu0
        %v1287 = vpop.f32.mrb[0].mxu0
        %v1288 = vpop.f32.mrb[0].mxu0
        %1289 = vdwg.mxu0
        %v1290 = vadd.f32 %v1076, %v1285
        %v1291 = vpack.c.bf16 %v1290, %v1290
        %vm1292 = vcmask 257024
        %1293 = vst.msk [vmem:[%s431] sm:$0xf] %vm1292, %v1291
        %s1294 = sand.u32 %s313, 1
        %s1295 = scalar_lea.sflag [#allocation4], %s1294
        %s1296 = sand.u32 %s313, 1
        %s1297 = smul.addr %s1296, 4
        %s1298 = scalar_lea.vmem [#allocation3], %s1297
        // Predicated region
        $region73: #{tpu_custom_call.1} parent=71 // pred_check
          %p1299 = pneg %p323
        $region74: #{tpu_custom_call.1} parent=71 // pred_check_branch
          %1301 = sbr.rel (%p1299) target = $region76
        $region75: #{tpu_custom_call.1} parent=71 // pred_region
          %s1303 = ssub.s32 64, 64
          %1304 = vsyncadd %s1295, %s1303
          %s1305 = smul.addr %s27, 64
          %s1306 = scalar_lea.hbm %s13, %s1305
          %s1308 = sshll.u32 %s1298, 4
          %s1309 = int_to_ptr.vmem [resolvable:$true] %s1308
          %1311 = dma.vmem_to_hbm [thread:$0]  %s1309, 64, %s1306, %s1295
        $region76: #{tpu_custom_call.1} parent=71 // pred_fallthru
          _
      $region72: #{tpu_custom_call.1} parent=5 // pred_fallthru
        _
      %p1312 = scmp.le.s32.totalorder 2, %s22
      // Predicated region
      $region77: #{tpu_custom_call.1} parent=5 // pred_check
        %p1313 = pneg %p1312
      $region78: #{tpu_custom_call.1} parent=5 // pred_check_branch
        %1315 = sbr.rel (%p1313) target = $region80
      $region79: #{tpu_custom_call.1} parent=5 // pred_region
        %s1316 = ssub.s32 %s22, 2
        // Predicated region
        $region81: #{tpu_custom_call.1} parent=79 // pred_check
          %p1317 = pneg %p329
        $region82: #{tpu_custom_call.1} parent=79 // pred_check_branch
          %1319 = sbr.rel (%p1317) target = $region84
        $region83: #{tpu_custom_call.1} parent=79 // pred_region
          %s1320 = sand.u32 %s314, 1
          %s1321 = scalar_lea.sflag [#allocation4], %s1320
          %s1322 = sand.u32 %s314, 1
          %s1323 = smul.addr %s1322, 4
          %s1324 = scalar_lea.vmem [#allocation3], %s1323
          %1325 = dma.done %s1321, 64
        $region84: #{tpu_custom_call.1} parent=79 // pred_fallthru
          _
      $region80: #{tpu_custom_call.1} parent=5 // pred_fallthru
        _
    $region6: #{tpu_custom_call.1} parent=1 // loop_footer
      %s26 = sadd.s32 1, %s22
    $region7: #{tpu_custom_call.1} parent=1 // loop_footer_branch
      %21 = sbr.rel target = $region3
    $region8: #{tpu_custom_call.1} parent=1 // loop_exit
      _
    %1326 = vsyncpa [#allocation4], 1
    %s1327 = scalar_lea.sflag [#allocation4], 1
    %1328 = vsyncpa %s1327, 1

</llo_original>
